<compile_context>
chip_gen: v7x
topology: tpu7x:2x2x1
jax: 0.10.0
libtpu: 0.0.40
codegen_flags: <defaults>
</compile_context>

<pallas_src>
import functools
import math

import jax
import jax.numpy as jnp
import numpy as np
from jax.experimental import pallas as pl
from jax.experimental.pallas import tpu as pltpu


def mha_kernel(q_ref, k_ref, v_ref, wqT_ref, wkT_ref, wvT_ref, woT_ref,
               b_qkv_ref, bo_ref, out_ref, *, inv_scale, op_dtype):
    bb, Sq, D = q_ref.shape
    Sk = k_ref.shape[1]
    nhead, _, d_k = wqT_ref.shape

    # Merge (bb, S) -> (bb*S): layout-free leading-dim collapse (Sq, Sk are
    # multiples of 8).  One bf16 cast per activation, hoisted out of the loop.
    xq = q_ref[...].reshape(bb * Sq, D).astype(op_dtype)
    xk = k_ref[...].reshape(bb * Sk, D).astype(op_dtype)
    xv = v_ref[...].reshape(bb * Sk, D).astype(op_dtype)

    b_qkv = b_qkv_ref[...]          # (3*nhead, d_k) f32: per-head q/k/v biases
    bo = bo_ref[...]                # (1, D) f32: output bias

    acc = jnp.zeros((bb * Sq, D), jnp.float32)

    # nhead is small & static -> unrolled.  Nothing in this loop lane-slices an
    # activation; per-head operands come straight from pre-split weight slabs.
    for h in range(nhead):
        Qh = (jnp.dot(xq, wqT_ref[h], preferred_element_type=jnp.float32)
              + b_qkv[h:h + 1])                                     # (bb*Sq, d_k)
        Kh = (jnp.dot(xk, wkT_ref[h], preferred_element_type=jnp.float32)
              + b_qkv[nhead + h:nhead + h + 1])                     # (bb*Sk, d_k)
        Vh = (jnp.dot(xv, wvT_ref[h], preferred_element_type=jnp.float32)
              + b_qkv[2 * nhead + h:2 * nhead + h + 1])             # (bb*Sk, d_k)

        # One cast each, then split the (free) leading dim back into batches.
        Qh = Qh.astype(op_dtype).reshape(bb, Sq, d_k)
        Kh = Kh.astype(op_dtype).reshape(bb, Sk, d_k)
        Vh = Vh.astype(op_dtype).reshape(bb, Sk, d_k)

        # Batched Q @ K^T contracting d_k (no transposes materialized).
        s = jnp.einsum("bqd,bkd->bqk", Qh, Kh,
                       preferred_element_type=jnp.float32) * inv_scale  # (bb,Sq,Sk)

        # TODO(synk): mask / key_padding_mask are asserted None in the wrapper
        # and nn.Dropout is eval-mode identity; neither is applied here.
        m = jnp.max(s, axis=-1, keepdims=True)
        p = jnp.exp(s - m)
        p = p * pl.reciprocal(jnp.sum(p, axis=-1, keepdims=True), approx=True)

        ctx_h = jnp.einsum("bqk,bkd->bqd", p.astype(op_dtype), Vh,
                           preferred_element_type=jnp.float32)          # (bb,Sq,d_k)

        # Per-head partial output projection accumulated in f32 (replaces the
        # lane-axis concat of 8-lane chunks + single output matmul).
        acc = acc + jnp.dot(ctx_h.astype(op_dtype).reshape(bb * Sq, d_k),
                            woT_ref[h], preferred_element_type=jnp.float32)

    out = acc + bo                                                       # (bb*Sq, D)
    # TODO(synk): at production sizes present a lane-dense out_spec (last dim a
    # multiple of 128); at D=32 the masked-store cost is negligible.
    out_ref[...] = out.reshape(bb, Sq, D).astype(out_ref.dtype)


def _pick_batch_block(batch):
    """How many batches to fold into one grid step."""
    try:
        kind = jax.devices()[0].device_kind.lower()
    except Exception:
        kind = ""
    # v7x has 2 TensorCores per chip: keep >=2 grid steps on the "parallel"
    # batch axis so both stay busy.  v5e/v6e have a single TC, so fold the
    # whole batch into one grid step (one fixed ~0.35us pipeline overhead).
    if "v7" in kind and batch > 1 and batch % 2 == 0:
        return batch // 2
    return batch


def multi_head_attention(query, key, value, params, nhead, *,
                         mask=None, key_padding_mask=None, dropout_p=0.0,
                         batch_block=None, mxu_dtype=jnp.bfloat16):
    # Fail loudly for configs the kernel does not implement.
    assert mask is None and key_padding_mask is None, \
        "mask / key_padding_mask are not supported by this Pallas kernel"
    assert dropout_p == 0.0, "only eval-mode (dropout = identity) is supported"

    B, Sq, D = query.shape
    Sk = key.shape[1]
    assert D % nhead == 0
    d_k = D // nhead
    inv_scale = 1.0 / math.sqrt(d_k)

    bb = batch_block if batch_block is not None else _pick_batch_block(B)
    assert B % bb == 0, f"batch {B} must be divisible by batch_block {bb}"

    # One-time wrapper-side weight prep (static).  PyTorch Linear computes
    # y = x @ W.T + b, so pre-transpose and split per head.
    def split_in(w):   # (D, D) -> (nhead, D, d_k): per-head input-proj slabs
        return w.T.reshape(D, nhead, d_k).transpose(1, 0, 2).astype(mxu_dtype)

    wqT = split_in(params["wq"])
    wkT = split_in(params["wk"])
    wvT = split_in(params["wv"])
    woT = params["wo"].T.reshape(nhead, d_k, D).astype(mxu_dtype)   # (nhead, d_k, D)

    b_qkv = jnp.concatenate(
        [params["bq"].reshape(nhead, d_k),
         params["bk"].reshape(nhead, d_k),
         params["bv"].reshape(nhead, d_k)], axis=0).astype(jnp.float32)  # (3*nhead, d_k)
    bo = params["bo"].reshape(1, D).astype(jnp.float32)

    kernel = functools.partial(mha_kernel, inv_scale=inv_scale, op_dtype=mxu_dtype)

    def const_spec(shape):
        return pl.BlockSpec(shape, lambda i: (0,) * len(shape))

    return pl.pallas_call(
        kernel,
        out_shape=jax.ShapeDtypeStruct((B, Sq, D), query.dtype),
        grid_spec=pltpu.PrefetchScalarGridSpec(
            num_scalar_prefetch=0,
            grid=(B // bb,),
            in_specs=[
                pl.BlockSpec((bb, Sq, D), lambda i: (i, 0, 0)),   # query
                pl.BlockSpec((bb, Sk, D), lambda i: (i, 0, 0)),   # key
                pl.BlockSpec((bb, Sk, D), lambda i: (i, 0, 0)),   # value
                const_spec((nhead, D, d_k)),                      # wq^T per head
                const_spec((nhead, D, d_k)),                      # wk^T per head
                const_spec((nhead, D, d_k)),                      # wv^T per head
                const_spec((nhead, d_k, D)),                      # wo^T per head
                const_spec((3 * nhead, d_k)),                     # q/k/v biases per head
                const_spec((1, D)),                               # output bias
            ],
            out_specs=pl.BlockSpec((bb, Sq, D), lambda i: (i, 0, 0)),
        ),
        compiler_params=pltpu.CompilerParams(
            dimension_semantics=("parallel",)),
        # TODO(synk): for production D >~ 2K the resident weight slabs need
        # pipeline_mode=pl.Buffered(1), a K-tiling grid axis and a raised
        # vmem_limit_bytes to fit v7x's 64 MiB VMEM; irrelevant at D=32.
    )(query, key, value, wqT, wkT, wvT, woT, b_qkv, bo)


def mha_reference(query, key, value, params, nhead):
    B, Sq, D = query.shape
    Sk = key.shape[1]
    d_k = D // nhead
    lin = lambda x, w, b: x @ w.T + b
    Q = lin(query, params["wq"], params["bq"]).reshape(B, Sq, nhead, d_k).transpose(0, 2, 1, 3)
    K = lin(key, params["wk"], params["bk"]).reshape(B, Sk, nhead, d_k).transpose(0, 2, 1, 3)
    V = lin(value, params["wv"], params["bv"]).reshape(B, Sk, nhead, d_k).transpose(0, 2, 1, 3)
    scores = Q @ jnp.swapaxes(K, -1, -2) / math.sqrt(d_k)
    attn = jax.nn.softmax(scores, axis=-1)
    ctx = (attn @ V).transpose(0, 2, 1, 3).reshape(B, Sq, D)
    return ctx @ params["wo"].T + params["bo"]


if __name__ == "__main__":
    # Small shapes consistent with the module: batch=2, seq=8, d_model=32, nhead=4.
    B, Sq, Sk, D, NHEAD = 2, 8, 8, 32, 4

    key0 = jax.random.PRNGKey(0)
    ks = jax.random.split(key0, 12)

    def w_init(k, shape):
        return jax.random.normal(k, shape, jnp.float32) * 0.05

    params = {
        "wq": w_init(ks[0], (D, D)), "bq": w_init(ks[1], (D,)),
        "wk": w_init(ks[2], (D, D)), "bk": w_init(ks[3], (D,)),
        "wv": w_init(ks[4], (D, D)), "bv": w_init(ks[5], (D,)),
        "wo": w_init(ks[6], (D, D)), "bo": w_init(ks[7], (D,)),
    }

    query = jax.random.normal(ks[8], (B, Sq, D), jnp.float32)
    key_in = jax.random.normal(ks[9], (B, Sk, D), jnp.float32)
    value = jax.random.normal(ks[10], (B, Sk, D), jnp.float32)

    out = multi_head_attention(query, key_in, value, params, NHEAD)
    out = jax.block_until_ready(out)

    ref = mha_reference(query, key_in, value, params, NHEAD)
    # bf16 MXU operands with f32 accumulation + approx reciprocal -> loosened
    # tolerance vs the f32 reference.
    np.testing.assert_allclose(np.asarray(out), np.asarray(ref), rtol=2e-2, atol=2e-2)

    print("KERNEL_OK")
</pallas_src>

<mosaic_0001>
module attributes {stable_mosaic.version = 11 : i64} {
  func.func @mha_kernel(%arg0: i32, %arg1: memref<2x8x32xf32, #tpu.memory_space<vmem>>, %arg2: memref<2x8x32xf32, #tpu.memory_space<vmem>>, %arg3: memref<2x8x32xf32, #tpu.memory_space<vmem>>, %arg4: memref<4x32x8xbf16, #tpu.memory_space<vmem>>, %arg5: memref<4x32x8xbf16, #tpu.memory_space<vmem>>, %arg6: memref<4x32x8xbf16, #tpu.memory_space<vmem>>, %arg7: memref<4x8x32xbf16, #tpu.memory_space<vmem>>, %arg8: memref<12x8xf32, #tpu.memory_space<vmem>>, %arg9: memref<1x32xf32, #tpu.memory_space<vmem>>, %arg10: memref<2x8x32xf32, #tpu.memory_space<vmem>>) attributes {dimension_semantics = [#tpu.dimension_semantics<parallel>], iteration_bounds = array<i64: 1>, scalar_prefetch = 0 : i64, scratch_operands = 0 : i64, tpu.core_type = #tpu.core_type<tc>, window_params = [{transform_indices = @transform_0, window_bounds = array<i64: 2, 8, 32>}, {transform_indices = @transform_1, window_bounds = array<i64: 2, 8, 32>}, {transform_indices = @transform_2, window_bounds = array<i64: 2, 8, 32>}, {pipeline_mode = #tpu.pipeline_mode<synchronous>, transform_indices = @transform_3, window_bounds = array<i64: 4, 32, 8>}, {pipeline_mode = #tpu.pipeline_mode<synchronous>, transform_indices = @transform_4, window_bounds = array<i64: 4, 32, 8>}, {pipeline_mode = #tpu.pipeline_mode<synchronous>, transform_indices = @transform_5, window_bounds = array<i64: 4, 32, 8>}, {pipeline_mode = #tpu.pipeline_mode<synchronous>, transform_indices = @transform_6, window_bounds = array<i64: 4, 8, 32>}, {pipeline_mode = #tpu.pipeline_mode<synchronous>, transform_indices = @transform_7, window_bounds = array<i64: 12, 8>}, {pipeline_mode = #tpu.pipeline_mode<synchronous>, transform_indices = @transform_8, window_bounds = array<i64: 1, 32>}, {transform_indices = @transform_9, window_bounds = array<i64: 2, 8, 32>}]} {
    %c0 = arith.constant 0 : index
    %c0_0 = arith.constant 0 : index
    %c0_1 = arith.constant 0 : index
    %0 = vector.load %arg1[%c0, %c0_0, %c0_1] : memref<2x8x32xf32, #tpu.memory_space<vmem>>, vector<2x8x32xf32>
    %1 = vector.shape_cast %0 : vector<2x8x32xf32> to vector<16x32xf32>
    %2 = arith.truncf %1 : vector<16x32xf32> to vector<16x32xbf16>
    %c0_2 = arith.constant 0 : index
    %c0_3 = arith.constant 0 : index
    %c0_4 = arith.constant 0 : index
    %3 = vector.load %arg2[%c0_2, %c0_3, %c0_4] : memref<2x8x32xf32, #tpu.memory_space<vmem>>, vector<2x8x32xf32>
    %4 = vector.shape_cast %3 : vector<2x8x32xf32> to vector<16x32xf32>
    %5 = arith.truncf %4 : vector<16x32xf32> to vector<16x32xbf16>
    %c0_5 = arith.constant 0 : index
    %c0_6 = arith.constant 0 : index
    %c0_7 = arith.constant 0 : index
    %6 = vector.load %arg3[%c0_5, %c0_6, %c0_7] : memref<2x8x32xf32, #tpu.memory_space<vmem>>, vector<2x8x32xf32>
    %7 = vector.shape_cast %6 : vector<2x8x32xf32> to vector<16x32xf32>
    %8 = arith.truncf %7 : vector<16x32xf32> to vector<16x32xbf16>
    %c0_8 = arith.constant 0 : index
    %c0_9 = arith.constant 0 : index
    %9 = vector.load %arg8[%c0_8, %c0_9] : memref<12x8xf32, #tpu.memory_space<vmem>>, vector<12x8xf32>
    %c0_10 = arith.constant 0 : index
    %c0_11 = arith.constant 0 : index
    %10 = vector.load %arg9[%c0_10, %c0_11] : memref<1x32xf32, #tpu.memory_space<vmem>>, vector<1x32xf32>
    %cst = arith.constant 0.000000e+00 : f32
    %11 = vector.broadcast %cst : f32 to vector<16x32xf32>
    %c0_12 = arith.constant 0 : index
    %c0_13 = arith.constant 0 : index
    %c0_14 = arith.constant 0 : index
    %12 = vector.load %arg4[%c0_12, %c0_13, %c0_14] : memref<4x32x8xbf16, #tpu.memory_space<vmem>>, vector<1x32x8xbf16>
    %13 = vector.shape_cast %12 : vector<1x32x8xbf16> to vector<32x8xbf16>
    %cst_15 = arith.constant dense<0.000000e+00> : vector<16x8xf32>
    %14 = tpu.matmul %2, %13, %cst_15 {dimension_numbers = #tpu.dot_dimension_numbers<[1], [0], [0], [1], [0, 0, 1, 1], [], []>} : vector<16x32xbf16>, vector<32x8xbf16>, vector<16x8xf32> -> vector<16x8xf32>
    %15 = vector.extract_strided_slice %9 {offsets = [0, 0], sizes = [1, 8], strides = [1, 1]} : vector<12x8xf32> to vector<1x8xf32>
    %16 = vector.broadcast %15 : vector<1x8xf32> to vector<16x8xf32>
    %17 = arith.addf %14, %16 : vector<16x8xf32>
    %c0_16 = arith.constant 0 : index
    %c0_17 = arith.constant 0 : index
    %c0_18 = arith.constant 0 : index
    %18 = vector.load %arg5[%c0_16, %c0_17, %c0_18] : memref<4x32x8xbf16, #tpu.memory_space<vmem>>, vector<1x32x8xbf16>
    %19 = vector.shape_cast %18 : vector<1x32x8xbf16> to vector<32x8xbf16>
    %cst_19 = arith.constant dense<0.000000e+00> : vector<16x8xf32>
    %20 = tpu.matmul %5, %19, %cst_19 {dimension_numbers = #tpu.dot_dimension_numbers<[1], [0], [0], [1], [0, 0, 1, 1], [], []>} : vector<16x32xbf16>, vector<32x8xbf16>, vector<16x8xf32> -> vector<16x8xf32>
    %21 = vector.extract_strided_slice %9 {offsets = [4, 0], sizes = [1, 8], strides = [1, 1]} : vector<12x8xf32> to vector<1x8xf32>
    %22 = vector.broadcast %21 : vector<1x8xf32> to vector<16x8xf32>
    %23 = arith.addf %20, %22 : vector<16x8xf32>
    %c0_20 = arith.constant 0 : index
    %c0_21 = arith.constant 0 : index
    %c0_22 = arith.constant 0 : index
    %24 = vector.load %arg6[%c0_20, %c0_21, %c0_22] : memref<4x32x8xbf16, #tpu.memory_space<vmem>>, vector<1x32x8xbf16>
    %25 = vector.shape_cast %24 : vector<1x32x8xbf16> to vector<32x8xbf16>
    %cst_23 = arith.constant dense<0.000000e+00> : vector<16x8xf32>
    %26 = tpu.matmul %8, %25, %cst_23 {dimension_numbers = #tpu.dot_dimension_numbers<[1], [0], [0], [1], [0, 0, 1, 1], [], []>} : vector<16x32xbf16>, vector<32x8xbf16>, vector<16x8xf32> -> vector<16x8xf32>
    %27 = vector.extract_strided_slice %9 {offsets = [8, 0], sizes = [1, 8], strides = [1, 1]} : vector<12x8xf32> to vector<1x8xf32>
    %28 = vector.broadcast %27 : vector<1x8xf32> to vector<16x8xf32>
    %29 = arith.addf %26, %28 : vector<16x8xf32>
    %30 = arith.truncf %17 : vector<16x8xf32> to vector<16x8xbf16>
    %31 = vector.shape_cast %30 : vector<16x8xbf16> to vector<2x8x8xbf16>
    %32 = arith.truncf %23 : vector<16x8xf32> to vector<16x8xbf16>
    %33 = vector.shape_cast %32 : vector<16x8xbf16> to vector<2x8x8xbf16>
    %34 = arith.truncf %29 : vector<16x8xf32> to vector<16x8xbf16>
    %35 = vector.shape_cast %34 : vector<16x8xbf16> to vector<2x8x8xbf16>
    "tpu.trace_start"() <{level = 10 : i32, message = "bqd,bkd->bqk"}> : () -> ()
    %cst_24 = arith.constant dense<0.000000e+00> : vector<2x8x8xf32>
    %36 = tpu.matmul %31, %33, %cst_24 {dimension_numbers = #tpu.dot_dimension_numbers<[2], [2], [1], [1], [0, 0, 0, 1, 1, 1], [0], [0]>} : vector<2x8x8xbf16>, vector<2x8x8xbf16>, vector<2x8x8xf32> -> vector<2x8x8xf32>
    "tpu.trace_stop"() : () -> ()
    %cst_25 = arith.constant 0.353553385 : f32
    %37 = vector.broadcast %cst_25 : f32 to vector<2x8x8xf32>
    %38 = arith.mulf %36, %37 : vector<2x8x8xf32>
    %cst_26 = arith.constant dense<0xFF800000> : vector<2x8xf32>
    %39 = vector.multi_reduction <maximumf>, %38, %cst_26 [2] : vector<2x8x8xf32> to vector<2x8xf32>
    %40 = vector.shape_cast %39 : vector<2x8xf32> to vector<2x8x1xf32>
    %41 = vector.broadcast %40 : vector<2x8x1xf32> to vector<2x8x8xf32>
    %42 = arith.subf %38, %41 : vector<2x8x8xf32>
    %43 = math.exp %42 : vector<2x8x8xf32>
    %cst_27 = arith.constant dense<0.000000e+00> : vector<2x8xf32>
    %44 = vector.multi_reduction <add>, %43, %cst_27 [2] : vector<2x8x8xf32> to vector<2x8xf32>
    %45 = vector.shape_cast %44 : vector<2x8xf32> to vector<2x8x1xf32>
    %46 = tpu.reciprocal %45 {approx = true} : vector<2x8x1xf32> -> vector<2x8x1xf32>
    %47 = vector.broadcast %46 : vector<2x8x1xf32> to vector<2x8x8xf32>
    %48 = arith.mulf %43, %47 : vector<2x8x8xf32>
    %49 = arith.truncf %48 : vector<2x8x8xf32> to vector<2x8x8xbf16>
    "tpu.trace_start"() <{level = 10 : i32, message = "bqk,bkd->bqd"}> : () -> ()
    %cst_28 = arith.constant dense<0.000000e+00> : vector<2x8x8xf32>
    %50 = tpu.matmul %49, %35, %cst_28 {dimension_numbers = #tpu.dot_dimension_numbers<[2], [1], [1], [2], [0, 0, 0, 1, 1, 2], [0], [0]>} : vector<2x8x8xbf16>, vector<2x8x8xbf16>, vector<2x8x8xf32> -> vector<2x8x8xf32>
    "tpu.trace_stop"() : () -> ()
    %51 = arith.truncf %50 : vector<2x8x8xf32> to vector<2x8x8xbf16>
    %52 = vector.shape_cast %51 : vector<2x8x8xbf16> to vector<16x8xbf16>
    %c0_29 = arith.constant 0 : index
    %c0_30 = arith.constant 0 : index
    %c0_31 = arith.constant 0 : index
    %53 = vector.load %arg7[%c0_29, %c0_30, %c0_31] : memref<4x8x32xbf16, #tpu.memory_space<vmem>>, vector<1x8x32xbf16>
    %54 = vector.shape_cast %53 : vector<1x8x32xbf16> to vector<8x32xbf16>
    %cst_32 = arith.constant dense<0.000000e+00> : vector<16x32xf32>
    %55 = tpu.matmul %52, %54, %cst_32 {dimension_numbers = #tpu.dot_dimension_numbers<[1], [0], [0], [1], [0, 0, 1, 1], [], []>} : vector<16x8xbf16>, vector<8x32xbf16>, vector<16x32xf32> -> vector<16x32xf32>
    %56 = arith.addf %11, %55 : vector<16x32xf32>
    %c1 = arith.constant 1 : index
    %c0_33 = arith.constant 0 : index
    %c0_34 = arith.constant 0 : index
    %57 = vector.load %arg4[%c1, %c0_33, %c0_34] : memref<4x32x8xbf16, #tpu.memory_space<vmem>>, vector<1x32x8xbf16>
    %58 = vector.shape_cast %57 : vector<1x32x8xbf16> to vector<32x8xbf16>
    %cst_35 = arith.constant dense<0.000000e+00> : vector<16x8xf32>
    %59 = tpu.matmul %2, %58, %cst_35 {dimension_numbers = #tpu.dot_dimension_numbers<[1], [0], [0], [1], [0, 0, 1, 1], [], []>} : vector<16x32xbf16>, vector<32x8xbf16>, vector<16x8xf32> -> vector<16x8xf32>
    %60 = vector.extract_strided_slice %9 {offsets = [1, 0], sizes = [1, 8], strides = [1, 1]} : vector<12x8xf32> to vector<1x8xf32>
    %61 = vector.broadcast %60 : vector<1x8xf32> to vector<16x8xf32>
    %62 = arith.addf %59, %61 : vector<16x8xf32>
    %c1_36 = arith.constant 1 : index
    %c0_37 = arith.constant 0 : index
    %c0_38 = arith.constant 0 : index
    %63 = vector.load %arg5[%c1_36, %c0_37, %c0_38] : memref<4x32x8xbf16, #tpu.memory_space<vmem>>, vector<1x32x8xbf16>
    %64 = vector.shape_cast %63 : vector<1x32x8xbf16> to vector<32x8xbf16>
    %cst_39 = arith.constant dense<0.000000e+00> : vector<16x8xf32>
    %65 = tpu.matmul %5, %64, %cst_39 {dimension_numbers = #tpu.dot_dimension_numbers<[1], [0], [0], [1], [0, 0, 1, 1], [], []>} : vector<16x32xbf16>, vector<32x8xbf16>, vector<16x8xf32> -> vector<16x8xf32>
    %66 = vector.extract_strided_slice %9 {offsets = [5, 0], sizes = [1, 8], strides = [1, 1]} : vector<12x8xf32> to vector<1x8xf32>
    %67 = vector.broadcast %66 : vector<1x8xf32> to vector<16x8xf32>
    %68 = arith.addf %65, %67 : vector<16x8xf32>
    %c1_40 = arith.constant 1 : index
    %c0_41 = arith.constant 0 : index
    %c0_42 = arith.constant 0 : index
    %69 = vector.load %arg6[%c1_40, %c0_41, %c0_42] : memref<4x32x8xbf16, #tpu.memory_space<vmem>>, vector<1x32x8xbf16>
    %70 = vector.shape_cast %69 : vector<1x32x8xbf16> to vector<32x8xbf16>
    %cst_43 = arith.constant dense<0.000000e+00> : vector<16x8xf32>
    %71 = tpu.matmul %8, %70, %cst_43 {dimension_numbers = #tpu.dot_dimension_numbers<[1], [0], [0], [1], [0, 0, 1, 1], [], []>} : vector<16x32xbf16>, vector<32x8xbf16>, vector<16x8xf32> -> vector<16x8xf32>
    %72 = vector.extract_strided_slice %9 {offsets = [9, 0], sizes = [1, 8], strides = [1, 1]} : vector<12x8xf32> to vector<1x8xf32>
    %73 = vector.broadcast %72 : vector<1x8xf32> to vector<16x8xf32>
    %74 = arith.addf %71, %73 : vector<16x8xf32>
    %75 = arith.truncf %62 : vector<16x8xf32> to vector<16x8xbf16>
    %76 = vector.shape_cast %75 : vector<16x8xbf16> to vector<2x8x8xbf16>
    %77 = arith.truncf %68 : vector<16x8xf32> to vector<16x8xbf16>
    %78 = vector.shape_cast %77 : vector<16x8xbf16> to vector<2x8x8xbf16>
    %79 = arith.truncf %74 : vector<16x8xf32> to vector<16x8xbf16>
    %80 = vector.shape_cast %79 : vector<16x8xbf16> to vector<2x8x8xbf16>
    "tpu.trace_start"() <{level = 10 : i32, message = "bqd,bkd->bqk"}> : () -> ()
    %cst_44 = arith.constant dense<0.000000e+00> : vector<2x8x8xf32>
    %81 = tpu.matmul %76, %78, %cst_44 {dimension_numbers = #tpu.dot_dimension_numbers<[2], [2], [1], [1], [0, 0, 0, 1, 1, 1], [0], [0]>} : vector<2x8x8xbf16>, vector<2x8x8xbf16>, vector<2x8x8xf32> -> vector<2x8x8xf32>
    "tpu.trace_stop"() : () -> ()
    %cst_45 = arith.constant 0.353553385 : f32
    %82 = vector.broadcast %cst_45 : f32 to vector<2x8x8xf32>
    %83 = arith.mulf %81, %82 : vector<2x8x8xf32>
    %cst_46 = arith.constant dense<0xFF800000> : vector<2x8xf32>
    %84 = vector.multi_reduction <maximumf>, %83, %cst_46 [2] : vector<2x8x8xf32> to vector<2x8xf32>
    %85 = vector.shape_cast %84 : vector<2x8xf32> to vector<2x8x1xf32>
    %86 = vector.broadcast %85 : vector<2x8x1xf32> to vector<2x8x8xf32>
    %87 = arith.subf %83, %86 : vector<2x8x8xf32>
    %88 = math.exp %87 : vector<2x8x8xf32>
    %cst_47 = arith.constant dense<0.000000e+00> : vector<2x8xf32>
    %89 = vector.multi_reduction <add>, %88, %cst_47 [2] : vector<2x8x8xf32> to vector<2x8xf32>
    %90 = vector.shape_cast %89 : vector<2x8xf32> to vector<2x8x1xf32>
    %91 = tpu.reciprocal %90 {approx = true} : vector<2x8x1xf32> -> vector<2x8x1xf32>
    %92 = vector.broadcast %91 : vector<2x8x1xf32> to vector<2x8x8xf32>
    %93 = arith.mulf %88, %92 : vector<2x8x8xf32>
    %94 = arith.truncf %93 : vector<2x8x8xf32> to vector<2x8x8xbf16>
    "tpu.trace_start"() <{level = 10 : i32, message = "bqk,bkd->bqd"}> : () -> ()
    %cst_48 = arith.constant dense<0.000000e+00> : vector<2x8x8xf32>
    %95 = tpu.matmul %94, %80, %cst_48 {dimension_numbers = #tpu.dot_dimension_numbers<[2], [1], [1], [2], [0, 0, 0, 1, 1, 2], [0], [0]>} : vector<2x8x8xbf16>, vector<2x8x8xbf16>, vector<2x8x8xf32> -> vector<2x8x8xf32>
    "tpu.trace_stop"() : () -> ()
    %96 = arith.truncf %95 : vector<2x8x8xf32> to vector<2x8x8xbf16>
    %97 = vector.shape_cast %96 : vector<2x8x8xbf16> to vector<16x8xbf16>
    %c1_49 = arith.constant 1 : index
    %c0_50 = arith.constant 0 : index
    %c0_51 = arith.constant 0 : index
    %98 = vector.load %arg7[%c1_49, %c0_50, %c0_51] : memref<4x8x32xbf16, #tpu.memory_space<vmem>>, vector<1x8x32xbf16>
    %99 = vector.shape_cast %98 : vector<1x8x32xbf16> to vector<8x32xbf16>
    %cst_52 = arith.constant dense<0.000000e+00> : vector<16x32xf32>
    %100 = tpu.matmul %97, %99, %cst_52 {dimension_numbers = #tpu.dot_dimension_numbers<[1], [0], [0], [1], [0, 0, 1, 1], [], []>} : vector<16x8xbf16>, vector<8x32xbf16>, vector<16x32xf32> -> vector<16x32xf32>
    %101 = arith.addf %56, %100 : vector<16x32xf32>
    %c2 = arith.constant 2 : index
    %c0_53 = arith.constant 0 : index
    %c0_54 = arith.constant 0 : index
    %102 = vector.load %arg4[%c2, %c0_53, %c0_54] : memref<4x32x8xbf16, #tpu.memory_space<vmem>>, vector<1x32x8xbf16>
    %103 = vector.shape_cast %102 : vector<1x32x8xbf16> to vector<32x8xbf16>
    %cst_55 = arith.constant dense<0.000000e+00> : vector<16x8xf32>
    %104 = tpu.matmul %2, %103, %cst_55 {dimension_numbers = #tpu.dot_dimension_numbers<[1], [0], [0], [1], [0, 0, 1, 1], [], []>} : vector<16x32xbf16>, vector<32x8xbf16>, vector<16x8xf32> -> vector<16x8xf32>
    %105 = vector.extract_strided_slice %9 {offsets = [2, 0], sizes = [1, 8], strides = [1, 1]} : vector<12x8xf32> to vector<1x8xf32>
    %106 = vector.broadcast %105 : vector<1x8xf32> to vector<16x8xf32>
    %107 = arith.addf %104, %106 : vector<16x8xf32>
    %c2_56 = arith.constant 2 : index
    %c0_57 = arith.constant 0 : index
    %c0_58 = arith.constant 0 : index
    %108 = vector.load %arg5[%c2_56, %c0_57, %c0_58] : memref<4x32x8xbf16, #tpu.memory_space<vmem>>, vector<1x32x8xbf16>
    %109 = vector.shape_cast %108 : vector<1x32x8xbf16> to vector<32x8xbf16>
    %cst_59 = arith.constant dense<0.000000e+00> : vector<16x8xf32>
    %110 = tpu.matmul %5, %109, %cst_59 {dimension_numbers = #tpu.dot_dimension_numbers<[1], [0], [0], [1], [0, 0, 1, 1], [], []>} : vector<16x32xbf16>, vector<32x8xbf16>, vector<16x8xf32> -> vector<16x8xf32>
    %111 = vector.extract_strided_slice %9 {offsets = [6, 0], sizes = [1, 8], strides = [1, 1]} : vector<12x8xf32> to vector<1x8xf32>
    %112 = vector.broadcast %111 : vector<1x8xf32> to vector<16x8xf32>
    %113 = arith.addf %110, %112 : vector<16x8xf32>
    %c2_60 = arith.constant 2 : index
    %c0_61 = arith.constant 0 : index
    %c0_62 = arith.constant 0 : index
    %114 = vector.load %arg6[%c2_60, %c0_61, %c0_62] : memref<4x32x8xbf16, #tpu.memory_space<vmem>>, vector<1x32x8xbf16>
    %115 = vector.shape_cast %114 : vector<1x32x8xbf16> to vector<32x8xbf16>
    %cst_63 = arith.constant dense<0.000000e+00> : vector<16x8xf32>
    %116 = tpu.matmul %8, %115, %cst_63 {dimension_numbers = #tpu.dot_dimension_numbers<[1], [0], [0], [1], [0, 0, 1, 1], [], []>} : vector<16x32xbf16>, vector<32x8xbf16>, vector<16x8xf32> -> vector<16x8xf32>
    %117 = vector.extract_strided_slice %9 {offsets = [10, 0], sizes = [1, 8], strides = [1, 1]} : vector<12x8xf32> to vector<1x8xf32>
    %118 = vector.broadcast %117 : vector<1x8xf32> to vector<16x8xf32>
    %119 = arith.addf %116, %118 : vector<16x8xf32>
    %120 = arith.truncf %107 : vector<16x8xf32> to vector<16x8xbf16>
    %121 = vector.shape_cast %120 : vector<16x8xbf16> to vector<2x8x8xbf16>
    %122 = arith.truncf %113 : vector<16x8xf32> to vector<16x8xbf16>
    %123 = vector.shape_cast %122 : vector<16x8xbf16> to vector<2x8x8xbf16>
    %124 = arith.truncf %119 : vector<16x8xf32> to vector<16x8xbf16>
    %125 = vector.shape_cast %124 : vector<16x8xbf16> to vector<2x8x8xbf16>
    "tpu.trace_start"() <{level = 10 : i32, message = "bqd,bkd->bqk"}> : () -> ()
    %cst_64 = arith.constant dense<0.000000e+00> : vector<2x8x8xf32>
    %126 = tpu.matmul %121, %123, %cst_64 {dimension_numbers = #tpu.dot_dimension_numbers<[2], [2], [1], [1], [0, 0, 0, 1, 1, 1], [0], [0]>} : vector<2x8x8xbf16>, vector<2x8x8xbf16>, vector<2x8x8xf32> -> vector<2x8x8xf32>
    "tpu.trace_stop"() : () -> ()
    %cst_65 = arith.constant 0.353553385 : f32
    %127 = vector.broadcast %cst_65 : f32 to vector<2x8x8xf32>
    %128 = arith.mulf %126, %127 : vector<2x8x8xf32>
    %cst_66 = arith.constant dense<0xFF800000> : vector<2x8xf32>
    %129 = vector.multi_reduction <maximumf>, %128, %cst_66 [2] : vector<2x8x8xf32> to vector<2x8xf32>
    %130 = vector.shape_cast %129 : vector<2x8xf32> to vector<2x8x1xf32>
    %131 = vector.broadcast %130 : vector<2x8x1xf32> to vector<2x8x8xf32>
    %132 = arith.subf %128, %131 : vector<2x8x8xf32>
    %133 = math.exp %132 : vector<2x8x8xf32>
    %cst_67 = arith.constant dense<0.000000e+00> : vector<2x8xf32>
    %134 = vector.multi_reduction <add>, %133, %cst_67 [2] : vector<2x8x8xf32> to vector<2x8xf32>
    %135 = vector.shape_cast %134 : vector<2x8xf32> to vector<2x8x1xf32>
    %136 = tpu.reciprocal %135 {approx = true} : vector<2x8x1xf32> -> vector<2x8x1xf32>
    %137 = vector.broadcast %136 : vector<2x8x1xf32> to vector<2x8x8xf32>
    %138 = arith.mulf %133, %137 : vector<2x8x8xf32>
    %139 = arith.truncf %138 : vector<2x8x8xf32> to vector<2x8x8xbf16>
    "tpu.trace_start"() <{level = 10 : i32, message = "bqk,bkd->bqd"}> : () -> ()
    %cst_68 = arith.constant dense<0.000000e+00> : vector<2x8x8xf32>
    %140 = tpu.matmul %139, %125, %cst_68 {dimension_numbers = #tpu.dot_dimension_numbers<[2], [1], [1], [2], [0, 0, 0, 1, 1, 2], [0], [0]>} : vector<2x8x8xbf16>, vector<2x8x8xbf16>, vector<2x8x8xf32> -> vector<2x8x8xf32>
    "tpu.trace_stop"() : () -> ()
    %141 = arith.truncf %140 : vector<2x8x8xf32> to vector<2x8x8xbf16>
    %142 = vector.shape_cast %141 : vector<2x8x8xbf16> to vector<16x8xbf16>
    %c2_69 = arith.constant 2 : index
    %c0_70 = arith.constant 0 : index
    %c0_71 = arith.constant 0 : index
    %143 = vector.load %arg7[%c2_69, %c0_70, %c0_71] : memref<4x8x32xbf16, #tpu.memory_space<vmem>>, vector<1x8x32xbf16>
    %144 = vector.shape_cast %143 : vector<1x8x32xbf16> to vector<8x32xbf16>
    %cst_72 = arith.constant dense<0.000000e+00> : vector<16x32xf32>
    %145 = tpu.matmul %142, %144, %cst_72 {dimension_numbers = #tpu.dot_dimension_numbers<[1], [0], [0], [1], [0, 0, 1, 1], [], []>} : vector<16x8xbf16>, vector<8x32xbf16>, vector<16x32xf32> -> vector<16x32xf32>
    %146 = arith.addf %101, %145 : vector<16x32xf32>
    %c3 = arith.constant 3 : index
    %c0_73 = arith.constant 0 : index
    %c0_74 = arith.constant 0 : index
    %147 = vector.load %arg4[%c3, %c0_73, %c0_74] : memref<4x32x8xbf16, #tpu.memory_space<vmem>>, vector<1x32x8xbf16>
    %148 = vector.shape_cast %147 : vector<1x32x8xbf16> to vector<32x8xbf16>
    %cst_75 = arith.constant dense<0.000000e+00> : vector<16x8xf32>
    %149 = tpu.matmul %2, %148, %cst_75 {dimension_numbers = #tpu.dot_dimension_numbers<[1], [0], [0], [1], [0, 0, 1, 1], [], []>} : vector<16x32xbf16>, vector<32x8xbf16>, vector<16x8xf32> -> vector<16x8xf32>
    %150 = vector.extract_strided_slice %9 {offsets = [3, 0], sizes = [1, 8], strides = [1, 1]} : vector<12x8xf32> to vector<1x8xf32>
    %151 = vector.broadcast %150 : vector<1x8xf32> to vector<16x8xf32>
    %152 = arith.addf %149, %151 : vector<16x8xf32>
    %c3_76 = arith.constant 3 : index
    %c0_77 = arith.constant 0 : index
    %c0_78 = arith.constant 0 : index
    %153 = vector.load %arg5[%c3_76, %c0_77, %c0_78] : memref<4x32x8xbf16, #tpu.memory_space<vmem>>, vector<1x32x8xbf16>
    %154 = vector.shape_cast %153 : vector<1x32x8xbf16> to vector<32x8xbf16>
    %cst_79 = arith.constant dense<0.000000e+00> : vector<16x8xf32>
    %155 = tpu.matmul %5, %154, %cst_79 {dimension_numbers = #tpu.dot_dimension_numbers<[1], [0], [0], [1], [0, 0, 1, 1], [], []>} : vector<16x32xbf16>, vector<32x8xbf16>, vector<16x8xf32> -> vector<16x8xf32>
    %156 = vector.extract_strided_slice %9 {offsets = [7, 0], sizes = [1, 8], strides = [1, 1]} : vector<12x8xf32> to vector<1x8xf32>
    %157 = vector.broadcast %156 : vector<1x8xf32> to vector<16x8xf32>
    %158 = arith.addf %155, %157 : vector<16x8xf32>
    %c3_80 = arith.constant 3 : index
    %c0_81 = arith.constant 0 : index
    %c0_82 = arith.constant 0 : index
    %159 = vector.load %arg6[%c3_80, %c0_81, %c0_82] : memref<4x32x8xbf16, #tpu.memory_space<vmem>>, vector<1x32x8xbf16>
    %160 = vector.shape_cast %159 : vector<1x32x8xbf16> to vector<32x8xbf16>
    %cst_83 = arith.constant dense<0.000000e+00> : vector<16x8xf32>
    %161 = tpu.matmul %8, %160, %cst_83 {dimension_numbers = #tpu.dot_dimension_numbers<[1], [0], [0], [1], [0, 0, 1, 1], [], []>} : vector<16x32xbf16>, vector<32x8xbf16>, vector<16x8xf32> -> vector<16x8xf32>
    %162 = vector.extract_strided_slice %9 {offsets = [11, 0], sizes = [1, 8], strides = [1, 1]} : vector<12x8xf32> to vector<1x8xf32>
    %163 = vector.broadcast %162 : vector<1x8xf32> to vector<16x8xf32>
    %164 = arith.addf %161, %163 : vector<16x8xf32>
    %165 = arith.truncf %152 : vector<16x8xf32> to vector<16x8xbf16>
    %166 = vector.shape_cast %165 : vector<16x8xbf16> to vector<2x8x8xbf16>
    %167 = arith.truncf %158 : vector<16x8xf32> to vector<16x8xbf16>
    %168 = vector.shape_cast %167 : vector<16x8xbf16> to vector<2x8x8xbf16>
    %169 = arith.truncf %164 : vector<16x8xf32> to vector<16x8xbf16>
    %170 = vector.shape_cast %169 : vector<16x8xbf16> to vector<2x8x8xbf16>
    "tpu.trace_start"() <{level = 10 : i32, message = "bqd,bkd->bqk"}> : () -> ()
    %cst_84 = arith.constant dense<0.000000e+00> : vector<2x8x8xf32>
    %171 = tpu.matmul %166, %168, %cst_84 {dimension_numbers = #tpu.dot_dimension_numbers<[2], [2], [1], [1], [0, 0, 0, 1, 1, 1], [0], [0]>} : vector<2x8x8xbf16>, vector<2x8x8xbf16>, vector<2x8x8xf32> -> vector<2x8x8xf32>
    "tpu.trace_stop"() : () -> ()
    %cst_85 = arith.constant 0.353553385 : f32
    %172 = vector.broadcast %cst_85 : f32 to vector<2x8x8xf32>
    %173 = arith.mulf %171, %172 : vector<2x8x8xf32>
    %cst_86 = arith.constant dense<0xFF800000> : vector<2x8xf32>
    %174 = vector.multi_reduction <maximumf>, %173, %cst_86 [2] : vector<2x8x8xf32> to vector<2x8xf32>
    %175 = vector.shape_cast %174 : vector<2x8xf32> to vector<2x8x1xf32>
    %176 = vector.broadcast %175 : vector<2x8x1xf32> to vector<2x8x8xf32>
    %177 = arith.subf %173, %176 : vector<2x8x8xf32>
    %178 = math.exp %177 : vector<2x8x8xf32>
    %cst_87 = arith.constant dense<0.000000e+00> : vector<2x8xf32>
    %179 = vector.multi_reduction <add>, %178, %cst_87 [2] : vector<2x8x8xf32> to vector<2x8xf32>
    %180 = vector.shape_cast %179 : vector<2x8xf32> to vector<2x8x1xf32>
    %181 = tpu.reciprocal %180 {approx = true} : vector<2x8x1xf32> -> vector<2x8x1xf32>
    %182 = vector.broadcast %181 : vector<2x8x1xf32> to vector<2x8x8xf32>
    %183 = arith.mulf %178, %182 : vector<2x8x8xf32>
    %184 = arith.truncf %183 : vector<2x8x8xf32> to vector<2x8x8xbf16>
    "tpu.trace_start"() <{level = 10 : i32, message = "bqk,bkd->bqd"}> : () -> ()
    %cst_88 = arith.constant dense<0.000000e+00> : vector<2x8x8xf32>
    %185 = tpu.matmul %184, %170, %cst_88 {dimension_numbers = #tpu.dot_dimension_numbers<[2], [1], [1], [2], [0, 0, 0, 1, 1, 2], [0], [0]>} : vector<2x8x8xbf16>, vector<2x8x8xbf16>, vector<2x8x8xf32> -> vector<2x8x8xf32>
    "tpu.trace_stop"() : () -> ()
    %186 = arith.truncf %185 : vector<2x8x8xf32> to vector<2x8x8xbf16>
    %187 = vector.shape_cast %186 : vector<2x8x8xbf16> to vector<16x8xbf16>
    %c3_89 = arith.constant 3 : index
    %c0_90 = arith.constant 0 : index
    %c0_91 = arith.constant 0 : index
    %188 = vector.load %arg7[%c3_89, %c0_90, %c0_91] : memref<4x8x32xbf16, #tpu.memory_space<vmem>>, vector<1x8x32xbf16>
    %189 = vector.shape_cast %188 : vector<1x8x32xbf16> to vector<8x32xbf16>
    %cst_92 = arith.constant dense<0.000000e+00> : vector<16x32xf32>
    %190 = tpu.matmul %187, %189, %cst_92 {dimension_numbers = #tpu.dot_dimension_numbers<[1], [0], [0], [1], [0, 0, 1, 1], [], []>} : vector<16x8xbf16>, vector<8x32xbf16>, vector<16x32xf32> -> vector<16x32xf32>
    %191 = arith.addf %146, %190 : vector<16x32xf32>
    %192 = vector.broadcast %10 : vector<1x32xf32> to vector<16x32xf32>
    %193 = arith.addf %191, %192 : vector<16x32xf32>
    %194 = vector.shape_cast %193 : vector<16x32xf32> to vector<2x8x32xf32>
    %c0_93 = arith.constant 0 : index
    %c0_94 = arith.constant 0 : index
    %c0_95 = arith.constant 0 : index
    %195 = vector.load %arg10[%c0_93, %c0_94, %c0_95] : memref<2x8x32xf32, #tpu.memory_space<vmem>>, vector<2x8x32xf32>
    tpu.vector_store %arg10[%c0_93, %c0_94, %c0_95], %194 {strides = array<i32>} : memref<2x8x32xf32, #tpu.memory_space<vmem>>, vector<2x8x32xf32>,
    return
  }
  func.func @transform_0(%arg0: i32) -> (i32, i32, i32) {
    %c0_i32 = arith.constant 0 : i32
    %c0_i32_0 = arith.constant 0 : i32
    %c0_i32_1 = arith.constant 0 : i32
    return %arg0, %c0_i32, %c0_i32_0 : i32, i32, i32
  }
  func.func @transform_1(%arg0: i32) -> (i32, i32, i32) {
    %c0_i32 = arith.constant 0 : i32
    %c0_i32_0 = arith.constant 0 : i32
    %c0_i32_1 = arith.constant 0 : i32
    return %arg0, %c0_i32, %c0_i32_0 : i32, i32, i32
  }
  func.func @transform_2(%arg0: i32) -> (i32, i32, i32) {
    %c0_i32 = arith.constant 0 : i32
    %c0_i32_0 = arith.constant 0 : i32
    %c0_i32_1 = arith.constant 0 : i32
    return %arg0, %c0_i32, %c0_i32_0 : i32, i32, i32
  }
  func.func @transform_3(%arg0: i32) -> (i32, i32, i32) {
    %c0_i32 = arith.constant 0 : i32
    %c0_i32_0 = arith.constant 0 : i32
    %c0_i32_1 = arith.constant 0 : i32
    %c0_i32_2 = arith.constant 0 : i32
    return %c0_i32, %c0_i32_0, %c0_i32_1 : i32, i32, i32
  }
  func.func @transform_4(%arg0: i32) -> (i32, i32, i32) {
    %c0_i32 = arith.constant 0 : i32
    %c0_i32_0 = arith.constant 0 : i32
    %c0_i32_1 = arith.constant 0 : i32
    %c0_i32_2 = arith.constant 0 : i32
    return %c0_i32, %c0_i32_0, %c0_i32_1 : i32, i32, i32
  }
  func.func @transform_5(%arg0: i32) -> (i32, i32, i32) {
    %c0_i32 = arith.constant 0 : i32
    %c0_i32_0 = arith.constant 0 : i32
    %c0_i32_1 = arith.constant 0 : i32
    %c0_i32_2 = arith.constant 0 : i32
    return %c0_i32, %c0_i32_0, %c0_i32_1 : i32, i32, i32
  }
  func.func @transform_6(%arg0: i32) -> (i32, i32, i32) {
    %c0_i32 = arith.constant 0 : i32
    %c0_i32_0 = arith.constant 0 : i32
    %c0_i32_1 = arith.constant 0 : i32
    %c0_i32_2 = arith.constant 0 : i32
    return %c0_i32, %c0_i32_0, %c0_i32_1 : i32, i32, i32
  }
  func.func @transform_7(%arg0: i32) -> (i32, i32) {
    %c0_i32 = arith.constant 0 : i32
    %c0_i32_0 = arith.constant 0 : i32
    %c0_i32_1 = arith.constant 0 : i32
    return %c0_i32, %c0_i32_0 : i32, i32
  }
  func.func @transform_8(%arg0: i32) -> (i32, i32) {
    %c0_i32 = arith.constant 0 : i32
    %c0_i32_0 = arith.constant 0 : i32
    %c0_i32_1 = arith.constant 0 : i32
    return %c0_i32, %c0_i32_0 : i32, i32
  }
  func.func @transform_9(%arg0: i32) -> (i32, i32, i32) {
    %c0_i32 = arith.constant 0 : i32
    %c0_i32_0 = arith.constant 0 : i32
    %c0_i32_1 = arith.constant 0 : i32
    return %arg0, %c0_i32, %c0_i32_0 : i32, i32, i32
  }
}

</mosaic_0001>

<llo_original>
// kernel: tpu_custom_call.1
$region0: #{tpu_custom_call.1}
  #allocation0 [shape = 'u32[]', space=smem, size = 0x4, offset = 0x4, fixed_abs, tag = 'smem constant byte address 0x4 - core index']
  #allocation1 [shape = 'u32[144,128]{1,0:T(1,128)}', space=vmem, size = 0x12000, scoped, tag = 'internal scratch']
  %s0 = inlined_call_operand.vmem [shape: f32[2,8,32], index: 0, kind: input, shape index: {}]
  %s1 = inlined_call_operand.vmem [shape: f32[2,8,32], index: 1, kind: input, shape index: {}]
  %s2 = inlined_call_operand.vmem [shape: f32[2,8,32], index: 2, kind: input, shape index: {}]
  %s3 = inlined_call_operand.vmem [shape: bf16[4,32,8], index: 3, kind: input, shape index: {}]
  %s4 = inlined_call_operand.vmem [shape: bf16[4,32,8], index: 4, kind: input, shape index: {}]
  %s5 = inlined_call_operand.vmem [shape: bf16[4,32,8], index: 5, kind: input, shape index: {}]
  %s6 = inlined_call_operand.vmem [shape: bf16[4,8,32], index: 6, kind: input, shape index: {}]
  %s7 = inlined_call_operand.vmem [shape: f32[12,8], index: 7, kind: input, shape index: {}]
  %s8 = inlined_call_operand.vmem [shape: f32[1,32], index: 8, kind: input, shape index: {}]
  %s9 = inlined_call_operand.hbm [shape: f32[2,8,32], index: 9, kind: output, shape index: {}]
  %s10 = sld [smem:[#allocation0]]
  $region46: #{tpu_custom_call.1} parent=0
    _
  %s12 = ssub.s32 1, %s10
  %s13 = scalar_select 0, %s12, %s10
  $region1: #{tpu_custom_call.1} parent=0
    #allocation2 [shape = 'u8[8192]{0}', space=vmem, size = 0x2000, scoped, tag = 'output window, operand 0, single buffered']
    #allocation3 [shape = 's32[1]{0}', space=sflag, size = 0x4, scoped, tag = 'scoped memory for tpu_custom_call.1']
    %14 = vsyncpa [#allocation3], 0
    // Predicated region
    $region2: #{tpu_custom_call.1} parent=1 // pred_check
      _
    $region3: #{tpu_custom_call.1} parent=1 // pred_check_branch
      %16 = sbr.rel (0) target = $region5
    $region4: #{tpu_custom_call.1} parent=1 // pred_region
      _
    $region5: #{tpu_custom_call.1} parent=1 // pred_fallthru
      _
    // Predicated region
    $region6: #{tpu_custom_call.1} parent=1 // pred_check
      _
    $region7: #{tpu_custom_call.1} parent=1 // pred_check_branch
      %18 = sbr.rel (0) target = $region9
    $region8: #{tpu_custom_call.1} parent=1 // pred_region
      _
    $region9: #{tpu_custom_call.1} parent=1 // pred_fallthru
      _
    // Predicated region
    $region10: #{tpu_custom_call.1} parent=1 // pred_check
      _
    $region11: #{tpu_custom_call.1} parent=1 // pred_check_branch
      %20 = sbr.rel (0) target = $region13
    $region12: #{tpu_custom_call.1} parent=1 // pred_region
      _
    $region13: #{tpu_custom_call.1} parent=1 // pred_fallthru
      _
    // Predicated region
    $region14: #{tpu_custom_call.1} parent=1 // pred_check
      _
    $region15: #{tpu_custom_call.1} parent=1 // pred_check_branch
      %22 = sbr.rel (0) target = $region17
    $region16: #{tpu_custom_call.1} parent=1 // pred_region
      _
    $region17: #{tpu_custom_call.1} parent=1 // pred_fallthru
      _
    // Predicated region
    $region18: #{tpu_custom_call.1} parent=1 // pred_check
      _
    $region19: #{tpu_custom_call.1} parent=1 // pred_check_branch
      %24 = sbr.rel (0) target = $region21
    $region20: #{tpu_custom_call.1} parent=1 // pred_region
      _
    $region21: #{tpu_custom_call.1} parent=1 // pred_fallthru
      _
    // Predicated region
    $region22: #{tpu_custom_call.1} parent=1 // pred_check
      _
    $region23: #{tpu_custom_call.1} parent=1 // pred_check_branch
      %26 = sbr.rel (0) target = $region25
    $region24: #{tpu_custom_call.1} parent=1 // pred_region
      _
    $region25: #{tpu_custom_call.1} parent=1 // pred_fallthru
      _
    // Predicated region
    $region26: #{tpu_custom_call.1} parent=1 // pred_check
      _
    $region27: #{tpu_custom_call.1} parent=1 // pred_check_branch
      %28 = sbr.rel (0) target = $region29
    $region28: #{tpu_custom_call.1} parent=1 // pred_region
      _
    $region29: #{tpu_custom_call.1} parent=1 // pred_fallthru
      _
    // Predicated region
    $region30: #{tpu_custom_call.1} parent=1 // pred_check
      _
    $region31: #{tpu_custom_call.1} parent=1 // pred_check_branch
      %30 = sbr.rel (0) target = $region33
    $region32: #{tpu_custom_call.1} parent=1 // pred_region
      _
    $region33: #{tpu_custom_call.1} parent=1 // pred_fallthru
      _
    // Predicated region
    $region34: #{tpu_custom_call.1} parent=1 // pred_check
      _
    $region35: #{tpu_custom_call.1} parent=1 // pred_check_branch
      %32 = sbr.rel (0) target = $region37
    $region36: #{tpu_custom_call.1} parent=1 // pred_region
      _
    $region37: #{tpu_custom_call.1} parent=1 // pred_fallthru
      _
    %v34 = vld [vmem:[%s0] sm:$0xff]
    %v35 = vld [vmem:[%s0 + $0x8] sm:$0xff]
    %v36 = vpack.c.bf16 %v35, %v34
    %v37 = vld [vmem:[%s1] sm:$0xff]
    %v38 = vld [vmem:[%s1 + $0x8] sm:$0xff]
    %v39 = vpack.c.bf16 %v38, %v37
    %v40 = vld [vmem:[%s2] sm:$0xff]
    %v41 = vld [vmem:[%s2 + $0x8] sm:$0xff]
    %v42 = vpack.c.bf16 %v41, %v40
    %v43 = vld [vmem:[%s7] sm:$0xff]
    %v44 = vld [vmem:[%s7 + $0x8] sm:$0xf]
    %v45 = vld [vmem:[%s8] sm:$0x1]
    %v46 = vld [vmem:[%s3] sm:$0xf]
    %v47 = vld [vmem:[%s3 + $0x4] sm:$0xf]
    %v48 = vld [vmem:[%s3 + $0x8] sm:$0xf]
    %v49 = vld [vmem:[%s3 + $0xc] sm:$0xf]
    %v50 = vlaneseq
    %v51 = vshrl.u32 %v50, 7
    %v52 = vsub.s32 0, %v51
    %v53 = vrot.slane %v43, %v52
    %v58 = vunpack.c.l.b16 %v46
    %v59 = vunpack.c.l.b16 %v47
    %v60 = vunpack.c.l.b16 %v48
    %v61 = vunpack.c.l.b16 %v49
    %v62 = vpack.c.b16 %v59, %v58
    %v63 = vpack.c.b16 %v61, %v60
    %vm66 = vcmask 261120
    %v68 = vsel %vm66, %v36, 0
    %70 = vmatprep.subr.bf16.mxu0 0
    %71 = vmatpush1.bf16.msra.mxu0 %v62
    %72 = vmatprep.subr.bf16.mxu0 0
    %73 = vmatpush1.bf16.msra.mxu0 %v63
    %74 = vmatprep.subr.bf16.mxu0 0
    %75 = vmatpush1.bf16.msra.mxu0 0
    %76 = vmatprep.subr.bf16.mxu0 0
    %77 = vmatpush1.bf16.msra.mxu0 0
    %78 = vmatprep.subr.bf16.mxu0 0
    %79 = vmatpush1.bf16.msra.mxu0 0
    %80 = vmatprep.subr.bf16.mxu0 0
    %81 = vmatpush1.bf16.msra.mxu0 0
    %82 = vmatprep.subr.bf16.mxu0 0
    %83 = vmatpush1.bf16.msra.mxu0 0
    %84 = vmatprep.subr.bf16.mxu0 0
    %85 = vmatpush1.bf16.msra.mxu0 0
    %86 = vmatprep.subr.bf16.mxu0 0
    %87 = vmatpush1.bf16.msra.mxu0 0
    %88 = vmatprep.subr.bf16.mxu0 0
    %89 = vmatpush1.bf16.msra.mxu0 0
    %90 = vmatprep.subr.bf16.mxu0 0
    %91 = vmatpush1.bf16.msra.mxu0 0
    %92 = vmatprep.subr.bf16.mxu0 0
    %93 = vmatpush1.bf16.msra.mxu0 0
    %94 = vmatprep.subr.bf16.mxu0 0
    %95 = vmatpush1.bf16.msra.mxu0 0
    %96 = vmatprep.subr.bf16.mxu0 0
    %97 = vmatpush1.bf16.msra.mxu0 0
    %98 = vmatprep.subr.bf16.mxu0 0
    %99 = vmatpush1.bf16.msra.mxu0 0
    %100 = vmatprep.subr.bf16.mxu0 0
    %101 = vmatpush1.bf16.msra.mxu0 0
    %102 = vmatprep.mubr.bf16.mxu0 0
    %103 = vmatmul.mubr.bf16.gmra.mrb[0].mxu0 %v68
    %v104 = vpop.f32.mrb[0].mxu0
    %v105 = vadd.f32 %v53, %v104
    %v106 = vpop.f32.mrb[0].mxu0
    %v107 = vpop.f32.mrb[0].mxu0
    %v108 = vadd.f32 %v53, %v107
    %v109 = vpop.f32.mrb[0].mxu0
    %110 = vdwg.mxu0
    %v111 = vld [vmem:[%s4] sm:$0xf]
    %v112 = vld [vmem:[%s4 + $0x4] sm:$0xf]
    %v113 = vld [vmem:[%s4 + $0x8] sm:$0xf]
    %v114 = vld [vmem:[%s4 + $0xc] sm:$0xf]
    %v115 = vlaneseq
    %v116 = vshrl.u32 %v115, 7
    %v117 = vsub.s32 4, %v116
    %v118 = vrot.slane %v43, %v117
    %v123 = vunpack.c.l.b16 %v111
    %v124 = vunpack.c.l.b16 %v112
    %v125 = vunpack.c.l.b16 %v113
    %v126 = vunpack.c.l.b16 %v114
    %v127 = vpack.c.b16 %v124, %v123
    %v128 = vpack.c.b16 %v126, %v125
    %v132 = vsel %vm66, %v39, 0
    %134 = vmatprep.subr.bf16.mxu0 0
    %135 = vmatpush1.bf16.msra.mxu0 %v127
    %136 = vmatprep.subr.bf16.mxu0 0
    %137 = vmatpush1.bf16.msra.mxu0 %v128
    %138 = vmatprep.subr.bf16.mxu0 0
    %139 = vmatpush1.bf16.msra.mxu0 0
    %140 = vmatprep.subr.bf16.mxu0 0
    %141 = vmatpush1.bf16.msra.mxu0 0
    %142 = vmatprep.subr.bf16.mxu0 0
    %143 = vmatpush1.bf16.msra.mxu0 0
    %144 = vmatprep.subr.bf16.mxu0 0
    %145 = vmatpush1.bf16.msra.mxu0 0
    %146 = vmatprep.subr.bf16.mxu0 0
    %147 = vmatpush1.bf16.msra.mxu0 0
    %148 = vmatprep.subr.bf16.mxu0 0
    %149 = vmatpush1.bf16.msra.mxu0 0
    %150 = vmatprep.subr.bf16.mxu0 0
    %151 = vmatpush1.bf16.msra.mxu0 0
    %152 = vmatprep.subr.bf16.mxu0 0
    %153 = vmatpush1.bf16.msra.mxu0 0
    %154 = vmatprep.subr.bf16.mxu0 0
    %155 = vmatpush1.bf16.msra.mxu0 0
    %156 = vmatprep.subr.bf16.mxu0 0
    %157 = vmatpush1.bf16.msra.mxu0 0
    %158 = vmatprep.subr.bf16.mxu0 0
    %159 = vmatpush1.bf16.msra.mxu0 0
    %160 = vmatprep.subr.bf16.mxu0 0
    %161 = vmatpush1.bf16.msra.mxu0 0
    %162 = vmatprep.subr.bf16.mxu0 0
    %163 = vmatpush1.bf16.msra.mxu0 0
    %164 = vmatprep.subr.bf16.mxu0 0
    %165 = vmatpush1.bf16.msra.mxu0 0
    %166 = vmatprep.mubr.bf16.mxu0 0
    %167 = vmatmul.mubr.bf16.gmra.mrb[0].mxu0 %v132
    %v168 = vpop.f32.mrb[0].mxu0
    %v169 = vadd.f32 %v118, %v168
    %v170 = vpop.f32.mrb[0].mxu0
    %v171 = vpop.f32.mrb[0].mxu0
    %v172 = vadd.f32 %v118, %v171
    %v173 = vpop.f32.mrb[0].mxu0
    %174 = vdwg.mxu0
    %v175 = vld [vmem:[%s5] sm:$0xf]
    %v176 = vld [vmem:[%s5 + $0x4] sm:$0xf]
    %v177 = vld [vmem:[%s5 + $0x8] sm:$0xf]
    %v178 = vld [vmem:[%s5 + $0xc] sm:$0xf]
    %v179 = vlaneseq
    %v180 = vshrl.u32 %v179, 7
    %v181 = vsub.s32 0, %v180
    %v182 = vrot.slane %v44, %v181
    %v187 = vunpack.c.l.b16 %v175
    %v188 = vunpack.c.l.b16 %v176
    %v189 = vunpack.c.l.b16 %v177
    %v190 = vunpack.c.l.b16 %v178
    %v191 = vpack.c.b16 %v188, %v187
    %v192 = vpack.c.b16 %v190, %v189
    %v196 = vsel %vm66, %v42, 0
    %198 = vmatprep.subr.bf16.mxu0 0
    %199 = vmatpush1.bf16.msra.mxu0 %v191
    %200 = vmatprep.subr.bf16.mxu0 0
    %201 = vmatpush1.bf16.msra.mxu0 %v192
    %202 = vmatprep.subr.bf16.mxu0 0
    %203 = vmatpush1.bf16.msra.mxu0 0
    %204 = vmatprep.subr.bf16.mxu0 0
    %205 = vmatpush1.bf16.msra.mxu0 0
    %206 = vmatprep.subr.bf16.mxu0 0
    %207 = vmatpush1.bf16.msra.mxu0 0
    %208 = vmatprep.subr.bf16.mxu0 0
    %209 = vmatpush1.bf16.msra.mxu0 0
    %210 = vmatprep.subr.bf16.mxu0 0
    %211 = vmatpush1.bf16.msra.mxu0 0
    %212 = vmatprep.subr.bf16.mxu0 0
    %213 = vmatpush1.bf16.msra.mxu0 0
    %214 = vmatprep.subr.bf16.mxu0 0
    %215 = vmatpush1.bf16.msra.mxu0 0
    %216 = vmatprep.subr.bf16.mxu0 0
    %217 = vmatpush1.bf16.msra.mxu0 0
    %218 = vmatprep.subr.bf16.mxu0 0
    %219 = vmatpush1.bf16.msra.mxu0 0
    %220 = vmatprep.subr.bf16.mxu0 0
    %221 = vmatpush1.bf16.msra.mxu0 0
    %222 = vmatprep.subr.bf16.mxu0 0
    %223 = vmatpush1.bf16.msra.mxu0 0
    %224 = vmatprep.subr.bf16.mxu0 0
    %225 = vmatpush1.bf16.msra.mxu0 0
    %226 = vmatprep.subr.bf16.mxu0 0
    %227 = vmatpush1.bf16.msra.mxu0 0
    %228 = vmatprep.subr.bf16.mxu0 0
    %229 = vmatpush1.bf16.msra.mxu0 0
    %230 = vmatprep.mubr.bf16.mxu0 0
    %231 = vmatmul.mubr.bf16.gmra.mrb[0].mxu0 %v196
    %v232 = vpop.f32.mrb[0].mxu0
    %v233 = vadd.f32 %v182, %v232
    %v234 = vpop.f32.mrb[0].mxu0
    %v235 = vpop.f32.mrb[0].mxu0
    %v236 = vadd.f32 %v182, %v235
    %v237 = vpop.f32.mrb[0].mxu0
    %238 = vdwg.mxu0
    %v239 = vpack.c.bf16 %v108, %v105
    %v241 = vunpack.c.l.b16 %v239
    %v242 = vunpack.c.h.b16 %v239
    %v243 = vpack.c.b16 %v241, %v241
    %v244 = vpack.c.b16 %v242, %v242
    %v245 = vpack.c.bf16 %v172, %v169
    %v247 = vunpack.c.l.b16 %v245
    %v248 = vunpack.c.h.b16 %v245
    %v249 = vpack.c.b16 %v247, %v247
    %v250 = vpack.c.b16 %v248, %v248
    %v251 = vpack.c.bf16 %v236, %v233
    %v253 = vunpack.c.l.b16 %v251
    %v254 = vunpack.c.h.b16 %v251
    %v255 = vpack.c.b16 %v253, %v253
    %v256 = vpack.c.b16 %v254, %v254
    %vm257 = vcmask 64512
    %v259 = vsel %vm257, %v243, 0
    %v262 = vsel %vm257, %v249, 0
    %264 = vmatprep.subr.bf16.mxu0 0
    %265 = vmatpush1.bf16.xpose.msra.mxu0 %v262
    %266 = vmatprep.subr.bf16.mxu0 0
    %267 = vmatpush1.bf16.xpose.msra.mxu0 0
    %268 = vmatprep.subr.bf16.mxu0 0
    %269 = vmatpush1.bf16.xpose.msra.mxu0 0
    %270 = vmatprep.subr.bf16.mxu0 0
    %271 = vmatpush1.bf16.xpose.msra.mxu0 0
    %272 = vmatprep.subr.bf16.mxu0 0
    %273 = vmatpush1.bf16.xpose.msra.mxu0 0
    %274 = vmatprep.subr.bf16.mxu0 0
    %275 = vmatpush1.bf16.xpose.msra.mxu0 0
    %276 = vmatprep.subr.bf16.mxu0 0
    %277 = vmatpush1.bf16.xpose.msra.mxu0 0
    %278 = vmatprep.subr.bf16.mxu0 0
    %279 = vmatpush1.bf16.xpose.msra.mxu0 0
    %280 = vmatprep.subr.bf16.mxu0 0
    %281 = vmatpush1.bf16.xpose.msra.mxu0 0
    %282 = vmatprep.subr.bf16.mxu0 0
    %283 = vmatpush1.bf16.xpose.msra.mxu0 0
    %284 = vmatprep.subr.bf16.mxu0 0
    %285 = vmatpush1.bf16.xpose.msra.mxu0 0
    %286 = vmatprep.subr.bf16.mxu0 0
    %287 = vmatpush1.bf16.xpose.msra.mxu0 0
    %288 = vmatprep.subr.bf16.mxu0 0
    %289 = vmatpush1.bf16.xpose.msra.mxu0 0
    %290 = vmatprep.subr.bf16.mxu0 0
    %291 = vmatpush1.bf16.xpose.msra.mxu0 0
    %292 = vmatprep.subr.bf16.mxu0 0
    %293 = vmatpush1.bf16.xpose.msra.mxu0 0
    %294 = vmatprep.subr.bf16.mxu0 0
    %295 = vmatpush1.bf16.xpose.msra.mxu0 0
    %296 = vmatprep.mubr.bf16.mxu0 0
    %297 = vmatmul.mubr.bf16.gmra.mrb[0].mxu0 %v259
    %v298 = vpop.f32.mrb[0].mxu0
    %v299 = vadd.f32 0.0, %v298
    %v300 = vpop.f32.mrb[0].mxu0
    %v301 = vpop.f32.mrb[0].mxu0
    %v302 = vpop.f32.mrb[0].mxu0
    %303 = vdwg.mxu0
    %v305 = vsel %vm257, %v244, 0
    %v308 = vsel %vm257, %v250, 0
    %310 = vmatprep.subr.bf16.mxu0 0
    %311 = vmatpush1.bf16.xpose.msra.mxu0 %v308
    %312 = vmatprep.subr.bf16.mxu0 0
    %313 = vmatpush1.bf16.xpose.msra.mxu0 0
    %314 = vmatprep.subr.bf16.mxu0 0
    %315 = vmatpush1.bf16.xpose.msra.mxu0 0
    %316 = vmatprep.subr.bf16.mxu0 0
    %317 = vmatpush1.bf16.xpose.msra.mxu0 0
    %318 = vmatprep.subr.bf16.mxu0 0
    %319 = vmatpush1.bf16.xpose.msra.mxu0 0
    %320 = vmatprep.subr.bf16.mxu0 0
    %321 = vmatpush1.bf16.xpose.msra.mxu0 0
    %322 = vmatprep.subr.bf16.mxu0 0
    %323 = vmatpush1.bf16.xpose.msra.mxu0 0
    %324 = vmatprep.subr.bf16.mxu0 0
    %325 = vmatpush1.bf16.xpose.msra.mxu0 0
    %326 = vmatprep.subr.bf16.mxu0 0
    %327 = vmatpush1.bf16.xpose.msra.mxu0 0
    %328 = vmatprep.subr.bf16.mxu0 0
    %329 = vmatpush1.bf16.xpose.msra.mxu0 0
    %330 = vmatprep.subr.bf16.mxu0 0
    %331 = vmatpush1.bf16.xpose.msra.mxu0 0
    %332 = vmatprep.subr.bf16.mxu0 0
    %333 = vmatpush1.bf16.xpose.msra.mxu0 0
    %334 = vmatprep.subr.bf16.mxu0 0
    %335 = vmatpush1.bf16.xpose.msra.mxu0 0
    %336 = vmatprep.subr.bf16.mxu0 0
    %337 = vmatpush1.bf16.xpose.msra.mxu0 0
    %338 = vmatprep.subr.bf16.mxu0 0
    %339 = vmatpush1.bf16.xpose.msra.mxu0 0
    %340 = vmatprep.subr.bf16.mxu0 0
    %341 = vmatpush1.bf16.xpose.msra.mxu0 0
    %342 = vmatprep.mubr.bf16.mxu0 0
    %343 = vmatmul.mubr.bf16.gmra.mrb[0].mxu0 %v305
    %v344 = vpop.f32.mrb[0].mxu0
    %v345 = vadd.f32 0.0, %v344
    %v346 = vpop.f32.mrb[0].mxu0
    %v347 = vpop.f32.mrb[0].mxu0
    %v348 = vpop.f32.mrb[0].mxu0
    %349 = vdwg.mxu0
    %v350 = vmul.f32 %v299, 0.35355338
    %v351 = vmul.f32 %v345, 0.35355338
    %v352 = vsel %vm257, %v350, -inf
    %353 = vmax.xlane.f32.xlu0 %v352
    %v354 = vpop.xlane.xlu0 %353
    %v355 = vsel %vm257, %v351, -inf
    %356 = vmax.xlane.f32.xlu0 %v355
    %v357 = vpop.xlane.xlu0 %356
    %v358 = vsub.f32 %v350, %v354
    %v359 = vsub.f32 %v351, %v357
    %v360 = vmul.f32 %v358, 1.442695
    %v361 = vpow.pop %v360
    %v362 = vmul.f32 %v359, 1.442695
    %v363 = vpow.pop %v362
    %v364 = vsel %vm257, %v361, 0.0
    %365 = vadd.xlane.f32.xlu0 %v364
    %v366 = vpop.xlane.xlu0 %365
    %v367 = vsel %vm257, %v363, 0.0
    %368 = vadd.xlane.f32.xlu0 %v367
    %v369 = vpop.xlane.xlu0 %368
    %v370 = vrcp.pop %v366
    %v371 = vrcp.pop %v369
    %v372 = vmul.f32 %v361, %v370
    %v373 = vmul.f32 %v363, %v371
    %v374 = vpack.c.bf16 %v372, %v372
    %v375 = vpack.c.bf16 %v373, %v373
    %v377 = vsel %vm257, %v374, 0
    %vm379 = vcmask 1043456
    %v381 = vsel %vm379, %v255, 0
    %383 = vmatprep.subr.bf16.mxu0 0
    %384 = vmatpush1.bf16.msra.mxu0 %v381
    %385 = vmatprep.subr.bf16.mxu0 0
    %386 = vmatpush1.bf16.msra.mxu0 0
    %387 = vmatprep.subr.bf16.mxu0 0
    %388 = vmatpush1.bf16.msra.mxu0 0
    %389 = vmatprep.subr.bf16.mxu0 0
    %390 = vmatpush1.bf16.msra.mxu0 0
    %391 = vmatprep.subr.bf16.mxu0 0
    %392 = vmatpush1.bf16.msra.mxu0 0
    %393 = vmatprep.subr.bf16.mxu0 0
    %394 = vmatpush1.bf16.msra.mxu0 0
    %395 = vmatprep.subr.bf16.mxu0 0
    %396 = vmatpush1.bf16.msra.mxu0 0
    %397 = vmatprep.subr.bf16.mxu0 0
    %398 = vmatpush1.bf16.msra.mxu0 0
    %399 = vmatprep.subr.bf16.mxu0 0
    %400 = vmatpush1.bf16.msra.mxu0 0
    %401 = vmatprep.subr.bf16.mxu0 0
    %402 = vmatpush1.bf16.msra.mxu0 0
    %403 = vmatprep.subr.bf16.mxu0 0
    %404 = vmatpush1.bf16.msra.mxu0 0
    %405 = vmatprep.subr.bf16.mxu0 0
    %406 = vmatpush1.bf16.msra.mxu0 0
    %407 = vmatprep.subr.bf16.mxu0 0
    %408 = vmatpush1.bf16.msra.mxu0 0
    %409 = vmatprep.subr.bf16.mxu0 0
    %410 = vmatpush1.bf16.msra.mxu0 0
    %411 = vmatprep.subr.bf16.mxu0 0
    %412 = vmatpush1.bf16.msra.mxu0 0
    %413 = vmatprep.subr.bf16.mxu0 0
    %414 = vmatpush1.bf16.msra.mxu0 0
    %415 = vmatprep.mubr.bf16.mxu0 0
    %416 = vmatmul.mubr.bf16.gmra.mrb[0].mxu0 %v377
    %v417 = vpop.f32.mrb[0].mxu0
    %v418 = vadd.f32 0.0, %v417
    %v419 = vpop.f32.mrb[0].mxu0
    %v420 = vpop.f32.mrb[0].mxu0
    %v421 = vpop.f32.mrb[0].mxu0
    %422 = vdwg.mxu0
    %v424 = vsel %vm257, %v375, 0
    %v427 = vsel %vm379, %v256, 0
    %429 = vmatprep.subr.bf16.mxu0 0
    %430 = vmatpush1.bf16.msra.mxu0 %v427
    %431 = vmatprep.subr.bf16.mxu0 0
    %432 = vmatpush1.bf16.msra.mxu0 0
    %433 = vmatprep.subr.bf16.mxu0 0
    %434 = vmatpush1.bf16.msra.mxu0 0
    %435 = vmatprep.subr.bf16.mxu0 0
    %436 = vmatpush1.bf16.msra.mxu0 0
    %437 = vmatprep.subr.bf16.mxu0 0
    %438 = vmatpush1.bf16.msra.mxu0 0
    %439 = vmatprep.subr.bf16.mxu0 0
    %440 = vmatpush1.bf16.msra.mxu0 0
    %441 = vmatprep.subr.bf16.mxu0 0
    %442 = vmatpush1.bf16.msra.mxu0 0
    %443 = vmatprep.subr.bf16.mxu0 0
    %444 = vmatpush1.bf16.msra.mxu0 0
    %445 = vmatprep.subr.bf16.mxu0 0
    %446 = vmatpush1.bf16.msra.mxu0 0
    %447 = vmatprep.subr.bf16.mxu0 0
    %448 = vmatpush1.bf16.msra.mxu0 0
    %449 = vmatprep.subr.bf16.mxu0 0
    %450 = vmatpush1.bf16.msra.mxu0 0
    %451 = vmatprep.subr.bf16.mxu0 0
    %452 = vmatpush1.bf16.msra.mxu0 0
    %453 = vmatprep.subr.bf16.mxu0 0
    %454 = vmatpush1.bf16.msra.mxu0 0
    %455 = vmatprep.subr.bf16.mxu0 0
    %456 = vmatpush1.bf16.msra.mxu0 0
    %457 = vmatprep.subr.bf16.mxu0 0
    %458 = vmatpush1.bf16.msra.mxu0 0
    %459 = vmatprep.subr.bf16.mxu0 0
    %460 = vmatpush1.bf16.msra.mxu0 0
    %461 = vmatprep.mubr.bf16.mxu0 0
    %462 = vmatmul.mubr.bf16.gmra.mrb[0].mxu0 %v424
    %v463 = vpop.f32.mrb[0].mxu0
    %v464 = vadd.f32 0.0, %v463
    %v465 = vpop.f32.mrb[0].mxu0
    %v466 = vpop.f32.mrb[0].mxu0
    %v467 = vpop.f32.mrb[0].mxu0
    %468 = vdwg.mxu0
    %v469 = vpack.c.bf16 %v418, %v418
    %v470 = vpack.c.bf16 %v464, %v464
    %v471 = vld [vmem:[%s6] sm:$0xf]
    %s472 = scalar_lea.vmem %s3, 16
    %v473 = vld [vmem:[%s472] sm:$0xf]
    %v474 = vld [vmem:[%s472 + $0x4] sm:$0xf]
    %v475 = vld [vmem:[%s472 + $0x8] sm:$0xf]
    %v476 = vld [vmem:[%s472 + $0xc] sm:$0xf]
    %v477 = vlaneseq
    %v478 = vshrl.u32 %v477, 7
    %v479 = vsub.s32 1, %v478
    %v480 = vrot.slane %v43, %v479
    %v485 = vunpack.c.l.b16 %v473
    %v486 = vunpack.c.l.b16 %v474
    %v487 = vunpack.c.l.b16 %v475
    %v488 = vunpack.c.l.b16 %v476
    %v489 = vpack.c.b16 %v486, %v485
    %v490 = vpack.c.b16 %v488, %v487
    %493 = vmatprep.subr.bf16.mxu0 0
    %494 = vmatpush1.bf16.msra.mxu0 %v489
    %495 = vmatprep.subr.bf16.mxu0 0
    %496 = vmatpush1.bf16.msra.mxu0 %v490
    %497 = vmatprep.subr.bf16.mxu0 0
    %498 = vmatpush1.bf16.msra.mxu0 0
    %499 = vmatprep.subr.bf16.mxu0 0
    %500 = vmatpush1.bf16.msra.mxu0 0
    %501 = vmatprep.subr.bf16.mxu0 0
    %502 = vmatpush1.bf16.msra.mxu0 0
    %503 = vmatprep.subr.bf16.mxu0 0
    %504 = vmatpush1.bf16.msra.mxu0 0
    %505 = vmatprep.subr.bf16.mxu0 0
    %506 = vmatpush1.bf16.msra.mxu0 0
    %507 = vmatprep.subr.bf16.mxu0 0
    %508 = vmatpush1.bf16.msra.mxu0 0
    %509 = vmatprep.subr.bf16.mxu0 0
    %510 = vmatpush1.bf16.msra.mxu0 0
    %511 = vmatprep.subr.bf16.mxu0 0
    %512 = vmatpush1.bf16.msra.mxu0 0
    %513 = vmatprep.subr.bf16.mxu0 0
    %514 = vmatpush1.bf16.msra.mxu0 0
    %515 = vmatprep.subr.bf16.mxu0 0
    %516 = vmatpush1.bf16.msra.mxu0 0
    %517 = vmatprep.subr.bf16.mxu0 0
    %518 = vmatpush1.bf16.msra.mxu0 0
    %519 = vmatprep.subr.bf16.mxu0 0
    %520 = vmatpush1.bf16.msra.mxu0 0
    %521 = vmatprep.subr.bf16.mxu0 0
    %522 = vmatpush1.bf16.msra.mxu0 0
    %523 = vmatprep.subr.bf16.mxu0 0
    %524 = vmatpush1.bf16.msra.mxu0 0
    %525 = vmatprep.mubr.bf16.mxu0 0
    %526 = vmatmul.mubr.bf16.gmra.mrb[0].mxu0 %v68
    %v527 = vpop.f32.mrb[0].mxu0
    %v528 = vadd.f32 %v480, %v527
    %v529 = vpop.f32.mrb[0].mxu0
    %v530 = vpop.f32.mrb[0].mxu0
    %v531 = vadd.f32 %v480, %v530
    %v532 = vpop.f32.mrb[0].mxu0
    %533 = vdwg.mxu0
    %s534 = scalar_lea.vmem %s4, 16
    %v535 = vld [vmem:[%s534] sm:$0xf]
    %v536 = vld [vmem:[%s534 + $0x4] sm:$0xf]
    %v537 = vld [vmem:[%s534 + $0x8] sm:$0xf]
    %v538 = vld [vmem:[%s534 + $0xc] sm:$0xf]
    %v539 = vlaneseq
    %v540 = vshrl.u32 %v539, 7
    %v541 = vsub.s32 5, %v540
    %v542 = vrot.slane %v43, %v541
    %v547 = vunpack.c.l.b16 %v535
    %v548 = vunpack.c.l.b16 %v536
    %v549 = vunpack.c.l.b16 %v537
    %v550 = vunpack.c.l.b16 %v538
    %v551 = vpack.c.b16 %v548, %v547
    %v552 = vpack.c.b16 %v550, %v549
    %555 = vmatprep.subr.bf16.mxu0 0
    %556 = vmatpush1.bf16.msra.mxu0 %v551
    %557 = vmatprep.subr.bf16.mxu0 0
    %558 = vmatpush1.bf16.msra.mxu0 %v552
    %559 = vmatprep.subr.bf16.mxu0 0
    %560 = vmatpush1.bf16.msra.mxu0 0
    %561 = vmatprep.subr.bf16.mxu0 0
    %562 = vmatpush1.bf16.msra.mxu0 0
    %563 = vmatprep.subr.bf16.mxu0 0
    %564 = vmatpush1.bf16.msra.mxu0 0
    %565 = vmatprep.subr.bf16.mxu0 0
    %566 = vmatpush1.bf16.msra.mxu0 0
    %567 = vmatprep.subr.bf16.mxu0 0
    %568 = vmatpush1.bf16.msra.mxu0 0
    %569 = vmatprep.subr.bf16.mxu0 0
    %570 = vmatpush1.bf16.msra.mxu0 0
    %571 = vmatprep.subr.bf16.mxu0 0
    %572 = vmatpush1.bf16.msra.mxu0 0
    %573 = vmatprep.subr.bf16.mxu0 0
    %574 = vmatpush1.bf16.msra.mxu0 0
    %575 = vmatprep.subr.bf16.mxu0 0
    %576 = vmatpush1.bf16.msra.mxu0 0
    %577 = vmatprep.subr.bf16.mxu0 0
    %578 = vmatpush1.bf16.msra.mxu0 0
    %579 = vmatprep.subr.bf16.mxu0 0
    %580 = vmatpush1.bf16.msra.mxu0 0
    %581 = vmatprep.subr.bf16.mxu0 0
    %582 = vmatpush1.bf16.msra.mxu0 0
    %583 = vmatprep.subr.bf16.mxu0 0
    %584 = vmatpush1.bf16.msra.mxu0 0
    %585 = vmatprep.subr.bf16.mxu0 0
    %586 = vmatpush1.bf16.msra.mxu0 0
    %587 = vmatprep.mubr.bf16.mxu0 0
    %588 = vmatmul.mubr.bf16.gmra.mrb[0].mxu0 %v132
    %v589 = vpop.f32.mrb[0].mxu0
    %v590 = vadd.f32 %v542, %v589
    %v591 = vpop.f32.mrb[0].mxu0
    %v592 = vpop.f32.mrb[0].mxu0
    %v593 = vadd.f32 %v542, %v592
    %v594 = vpop.f32.mrb[0].mxu0
    %595 = vdwg.mxu0
    %s596 = scalar_lea.vmem %s5, 16
    %v597 = vld [vmem:[%s596] sm:$0xf]
    %v598 = vld [vmem:[%s596 + $0x4] sm:$0xf]
    %v599 = vld [vmem:[%s596 + $0x8] sm:$0xf]
    %v600 = vld [vmem:[%s596 + $0xc] sm:$0xf]
    %v601 = vlaneseq
    %v602 = vshrl.u32 %v601, 7
    %v603 = vsub.s32 1, %v602
    %v604 = vrot.slane %v44, %v603
    %v609 = vunpack.c.l.b16 %v597
    %v610 = vunpack.c.l.b16 %v598
    %v611 = vunpack.c.l.b16 %v599
    %v612 = vunpack.c.l.b16 %v600
    %v613 = vpack.c.b16 %v610, %v609
    %v614 = vpack.c.b16 %v612, %v611
    %617 = vmatprep.subr.bf16.mxu0 0
    %618 = vmatpush1.bf16.msra.mxu0 %v613
    %619 = vmatprep.subr.bf16.mxu0 0
    %620 = vmatpush1.bf16.msra.mxu0 %v614
    %621 = vmatprep.subr.bf16.mxu0 0
    %622 = vmatpush1.bf16.msra.mxu0 0
    %623 = vmatprep.subr.bf16.mxu0 0
    %624 = vmatpush1.bf16.msra.mxu0 0
    %625 = vmatprep.subr.bf16.mxu0 0
    %626 = vmatpush1.bf16.msra.mxu0 0
    %627 = vmatprep.subr.bf16.mxu0 0
    %628 = vmatpush1.bf16.msra.mxu0 0
    %629 = vmatprep.subr.bf16.mxu0 0
    %630 = vmatpush1.bf16.msra.mxu0 0
    %631 = vmatprep.subr.bf16.mxu0 0
    %632 = vmatpush1.bf16.msra.mxu0 0
    %633 = vmatprep.subr.bf16.mxu0 0
    %634 = vmatpush1.bf16.msra.mxu0 0
    %635 = vmatprep.subr.bf16.mxu0 0
    %636 = vmatpush1.bf16.msra.mxu0 0
    %637 = vmatprep.subr.bf16.mxu0 0
    %638 = vmatpush1.bf16.msra.mxu0 0
    %639 = vmatprep.subr.bf16.mxu0 0
    %640 = vmatpush1.bf16.msra.mxu0 0
    %641 = vmatprep.subr.bf16.mxu0 0
    %642 = vmatpush1.bf16.msra.mxu0 0
    %643 = vmatprep.subr.bf16.mxu0 0
    %644 = vmatpush1.bf16.msra.mxu0 0
    %645 = vmatprep.subr.bf16.mxu0 0
    %646 = vmatpush1.bf16.msra.mxu0 0
    %647 = vmatprep.subr.bf16.mxu0 0
    %648 = vmatpush1.bf16.msra.mxu0 0
    %649 = vmatprep.mubr.bf16.mxu0 0
    %650 = vmatmul.mubr.bf16.gmra.mrb[0].mxu0 %v196
    %v651 = vpop.f32.mrb[0].mxu0
    %v652 = vadd.f32 %v604, %v651
    %v653 = vpop.f32.mrb[0].mxu0
    %v654 = vpop.f32.mrb[0].mxu0
    %v655 = vadd.f32 %v604, %v654
    %v656 = vpop.f32.mrb[0].mxu0
    %657 = vdwg.mxu0
    %v658 = vpack.c.bf16 %v531, %v528
    %v660 = vunpack.c.l.b16 %v658
    %v661 = vunpack.c.h.b16 %v658
    %v662 = vpack.c.b16 %v660, %v660
    %v663 = vpack.c.b16 %v661, %v661
    %v664 = vpack.c.bf16 %v593, %v590
    %v666 = vunpack.c.l.b16 %v664
    %v667 = vunpack.c.h.b16 %v664
    %v668 = vpack.c.b16 %v666, %v666
    %v669 = vpack.c.b16 %v667, %v667
    %v670 = vpack.c.bf16 %v655, %v652
    %v672 = vunpack.c.l.b16 %v670
    %v673 = vunpack.c.h.b16 %v670
    %v674 = vpack.c.b16 %v672, %v672
    %v675 = vpack.c.b16 %v673, %v673
    %v677 = vsel %vm257, %v662, 0
    %v680 = vsel %vm257, %v668, 0
    %682 = vmatprep.subr.bf16.mxu0 0
    %683 = vmatpush1.bf16.xpose.msra.mxu0 %v680
    %684 = vmatprep.subr.bf16.mxu0 0
    %685 = vmatpush1.bf16.xpose.msra.mxu0 0
    %686 = vmatprep.subr.bf16.mxu0 0
    %687 = vmatpush1.bf16.xpose.msra.mxu0 0
    %688 = vmatprep.subr.bf16.mxu0 0
    %689 = vmatpush1.bf16.xpose.msra.mxu0 0
    %690 = vmatprep.subr.bf16.mxu0 0
    %691 = vmatpush1.bf16.xpose.msra.mxu0 0
    %692 = vmatprep.subr.bf16.mxu0 0
    %693 = vmatpush1.bf16.xpose.msra.mxu0 0
    %694 = vmatprep.subr.bf16.mxu0 0
    %695 = vmatpush1.bf16.xpose.msra.mxu0 0
    %696 = vmatprep.subr.bf16.mxu0 0
    %697 = vmatpush1.bf16.xpose.msra.mxu0 0
    %698 = vmatprep.subr.bf16.mxu0 0
    %699 = vmatpush1.bf16.xpose.msra.mxu0 0
    %700 = vmatprep.subr.bf16.mxu0 0
    %701 = vmatpush1.bf16.xpose.msra.mxu0 0
    %702 = vmatprep.subr.bf16.mxu0 0
    %703 = vmatpush1.bf16.xpose.msra.mxu0 0
    %704 = vmatprep.subr.bf16.mxu0 0
    %705 = vmatpush1.bf16.xpose.msra.mxu0 0
    %706 = vmatprep.subr.bf16.mxu0 0
    %707 = vmatpush1.bf16.xpose.msra.mxu0 0
    %708 = vmatprep.subr.bf16.mxu0 0
    %709 = vmatpush1.bf16.xpose.msra.mxu0 0
    %710 = vmatprep.subr.bf16.mxu0 0
    %711 = vmatpush1.bf16.xpose.msra.mxu0 0
    %712 = vmatprep.subr.bf16.mxu0 0
    %713 = vmatpush1.bf16.xpose.msra.mxu0 0
    %714 = vmatprep.mubr.bf16.mxu0 0
    %715 = vmatmul.mubr.bf16.gmra.mrb[0].mxu0 %v677
    %v716 = vpop.f32.mrb[0].mxu0
    %v717 = vadd.f32 0.0, %v716
    %v718 = vpop.f32.mrb[0].mxu0
    %v719 = vpop.f32.mrb[0].mxu0
    %v720 = vpop.f32.mrb[0].mxu0
    %721 = vdwg.mxu0
    %v723 = vsel %vm257, %v663, 0
    %v726 = vsel %vm257, %v669, 0
    %728 = vmatprep.subr.bf16.mxu0 0
    %729 = vmatpush1.bf16.xpose.msra.mxu0 %v726
    %730 = vmatprep.subr.bf16.mxu0 0
    %731 = vmatpush1.bf16.xpose.msra.mxu0 0
    %732 = vmatprep.subr.bf16.mxu0 0
    %733 = vmatpush1.bf16.xpose.msra.mxu0 0
    %734 = vmatprep.subr.bf16.mxu0 0
    %735 = vmatpush1.bf16.xpose.msra.mxu0 0
    %736 = vmatprep.subr.bf16.mxu0 0
    %737 = vmatpush1.bf16.xpose.msra.mxu0 0
    %738 = vmatprep.subr.bf16.mxu0 0
    %739 = vmatpush1.bf16.xpose.msra.mxu0 0
    %740 = vmatprep.subr.bf16.mxu0 0
    %741 = vmatpush1.bf16.xpose.msra.mxu0 0
    %742 = vmatprep.subr.bf16.mxu0 0
    %743 = vmatpush1.bf16.xpose.msra.mxu0 0
    %744 = vmatprep.subr.bf16.mxu0 0
    %745 = vmatpush1.bf16.xpose.msra.mxu0 0
    %746 = vmatprep.subr.bf16.mxu0 0
    %747 = vmatpush1.bf16.xpose.msra.mxu0 0
    %748 = vmatprep.subr.bf16.mxu0 0
    %749 = vmatpush1.bf16.xpose.msra.mxu0 0
    %750 = vmatprep.subr.bf16.mxu0 0
    %751 = vmatpush1.bf16.xpose.msra.mxu0 0
    %752 = vmatprep.subr.bf16.mxu0 0
    %753 = vmatpush1.bf16.xpose.msra.mxu0 0
    %754 = vmatprep.subr.bf16.mxu0 0
    %755 = vmatpush1.bf16.xpose.msra.mxu0 0
    %756 = vmatprep.subr.bf16.mxu0 0
    %757 = vmatpush1.bf16.xpose.msra.mxu0 0
    %758 = vmatprep.subr.bf16.mxu0 0
    %759 = vmatpush1.bf16.xpose.msra.mxu0 0
    %760 = vmatprep.mubr.bf16.mxu0 0
    %761 = vmatmul.mubr.bf16.gmra.mrb[0].mxu0 %v723
    %v762 = vpop.f32.mrb[0].mxu0
    %v763 = vadd.f32 0.0, %v762
    %v764 = vpop.f32.mrb[0].mxu0
    %v765 = vpop.f32.mrb[0].mxu0
    %v766 = vpop.f32.mrb[0].mxu0
    %767 = vdwg.mxu0
    %v768 = vmul.f32 %v717, 0.35355338
    %v769 = vmul.f32 %v763, 0.35355338
    %v770 = vsel %vm257, %v768, -inf
    %771 = vmax.xlane.f32.xlu0 %v770
    %v772 = vpop.xlane.xlu0 %771
    %v773 = vsel %vm257, %v769, -inf
    %774 = vmax.xlane.f32.xlu0 %v773
    %v775 = vpop.xlane.xlu0 %774
    %v776 = vsub.f32 %v768, %v772
    %v777 = vsub.f32 %v769, %v775
    %v778 = vmul.f32 %v776, 1.442695
    %v779 = vpow.pop %v778
    %v780 = vmul.f32 %v777, 1.442695
    %v781 = vpow.pop %v780
    %v782 = vsel %vm257, %v779, 0.0
    %783 = vadd.xlane.f32.xlu0 %v782
    %v784 = vpop.xlane.xlu0 %783
    %v785 = vsel %vm257, %v781, 0.0
    %786 = vadd.xlane.f32.xlu0 %v785
    %v787 = vpop.xlane.xlu0 %786
    %v788 = vrcp.pop %v784
    %v789 = vrcp.pop %v787
    %v790 = vmul.f32 %v779, %v788
    %v791 = vmul.f32 %v781, %v789
    %v792 = vpack.c.bf16 %v790, %v790
    %v793 = vpack.c.bf16 %v791, %v791
    %v795 = vsel %vm257, %v792, 0
    %v798 = vsel %vm379, %v674, 0
    %800 = vmatprep.subr.bf16.mxu0 0
    %801 = vmatpush1.bf16.msra.mxu0 %v798
    %802 = vmatprep.subr.bf16.mxu0 0
    %803 = vmatpush1.bf16.msra.mxu0 0
    %804 = vmatprep.subr.bf16.mxu0 0
    %805 = vmatpush1.bf16.msra.mxu0 0
    %806 = vmatprep.subr.bf16.mxu0 0
    %807 = vmatpush1.bf16.msra.mxu0 0
    %808 = vmatprep.subr.bf16.mxu0 0
    %809 = vmatpush1.bf16.msra.mxu0 0
    %810 = vmatprep.subr.bf16.mxu0 0
    %811 = vmatpush1.bf16.msra.mxu0 0
    %812 = vmatprep.subr.bf16.mxu0 0
    %813 = vmatpush1.bf16.msra.mxu0 0
    %814 = vmatprep.subr.bf16.mxu0 0
    %815 = vmatpush1.bf16.msra.mxu0 0
    %816 = vmatprep.subr.bf16.mxu0 0
    %817 = vmatpush1.bf16.msra.mxu0 0
    %818 = vmatprep.subr.bf16.mxu0 0
    %819 = vmatpush1.bf16.msra.mxu0 0
    %820 = vmatprep.subr.bf16.mxu0 0
    %821 = vmatpush1.bf16.msra.mxu0 0
    %822 = vmatprep.subr.bf16.mxu0 0
    %823 = vmatpush1.bf16.msra.mxu0 0
    %824 = vmatprep.subr.bf16.mxu0 0
    %825 = vmatpush1.bf16.msra.mxu0 0
    %826 = vmatprep.subr.bf16.mxu0 0
    %827 = vmatpush1.bf16.msra.mxu0 0
    %828 = vmatprep.subr.bf16.mxu0 0
    %829 = vmatpush1.bf16.msra.mxu0 0
    %830 = vmatprep.subr.bf16.mxu0 0
    %831 = vmatpush1.bf16.msra.mxu0 0
    %832 = vmatprep.mubr.bf16.mxu0 0
    %833 = vmatmul.mubr.bf16.gmra.mrb[0].mxu0 %v795
    %v834 = vpop.f32.mrb[0].mxu0
    %v835 = vadd.f32 0.0, %v834
    %v836 = vpop.f32.mrb[0].mxu0
    %v837 = vpop.f32.mrb[0].mxu0
    %v838 = vpop.f32.mrb[0].mxu0
    %839 = vdwg.mxu0
    %v841 = vsel %vm257, %v793, 0
    %v844 = vsel %vm379, %v675, 0
    %846 = vmatprep.subr.bf16.mxu0 0
    %847 = vmatpush1.bf16.msra.mxu0 %v844
    %848 = vmatprep.subr.bf16.mxu0 0
    %849 = vmatpush1.bf16.msra.mxu0 0
    %850 = vmatprep.subr.bf16.mxu0 0
    %851 = vmatpush1.bf16.msra.mxu0 0
    %852 = vmatprep.subr.bf16.mxu0 0
    %853 = vmatpush1.bf16.msra.mxu0 0
    %854 = vmatprep.subr.bf16.mxu0 0
    %855 = vmatpush1.bf16.msra.mxu0 0
    %856 = vmatprep.subr.bf16.mxu0 0
    %857 = vmatpush1.bf16.msra.mxu0 0
    %858 = vmatprep.subr.bf16.mxu0 0
    %859 = vmatpush1.bf16.msra.mxu0 0
    %860 = vmatprep.subr.bf16.mxu0 0
    %861 = vmatpush1.bf16.msra.mxu0 0
    %862 = vmatprep.subr.bf16.mxu0 0
    %863 = vmatpush1.bf16.msra.mxu0 0
    %864 = vmatprep.subr.bf16.mxu0 0
    %865 = vmatpush1.bf16.msra.mxu0 0
    %866 = vmatprep.subr.bf16.mxu0 0
    %867 = vmatpush1.bf16.msra.mxu0 0
    %868 = vmatprep.subr.bf16.mxu0 0
    %869 = vmatpush1.bf16.msra.mxu0 0
    %870 = vmatprep.subr.bf16.mxu0 0
    %871 = vmatpush1.bf16.msra.mxu0 0
    %872 = vmatprep.subr.bf16.mxu0 0
    %873 = vmatpush1.bf16.msra.mxu0 0
    %874 = vmatprep.subr.bf16.mxu0 0
    %875 = vmatpush1.bf16.msra.mxu0 0
    %876 = vmatprep.subr.bf16.mxu0 0
    %877 = vmatpush1.bf16.msra.mxu0 0
    %878 = vmatprep.mubr.bf16.mxu0 0
    %879 = vmatmul.mubr.bf16.gmra.mrb[0].mxu0 %v841
    %v880 = vpop.f32.mrb[0].mxu0
    %v881 = vadd.f32 0.0, %v880
    %v882 = vpop.f32.mrb[0].mxu0
    %v883 = vpop.f32.mrb[0].mxu0
    %v884 = vpop.f32.mrb[0].mxu0
    %885 = vdwg.mxu0
    %v886 = vpack.c.bf16 %v835, %v835
    %v887 = vpack.c.bf16 %v881, %v881
    %s888 = scalar_lea.vmem %s6, 4
    %v889 = vld [vmem:[%s888] sm:$0xf]
    %v892 = vunpack.c.l.b16 %v886
    %v893 = vunpack.c.l.b16 %v887
    %v894 = vpack.c.b16 %v893, %v892
    %v896 = vsel %vm257, %v894, 0
    %v899 = vsel %vm379, %v889, 0
    %901 = vmatprep.subr.bf16.mxu0 0
    %902 = vmatpush1.bf16.msra.mxu0 %v899
    %903 = vmatprep.subr.bf16.mxu0 0
    %904 = vmatpush1.bf16.msra.mxu0 0
    %905 = vmatprep.subr.bf16.mxu0 0
    %906 = vmatpush1.bf16.msra.mxu0 0
    %907 = vmatprep.subr.bf16.mxu0 0
    %908 = vmatpush1.bf16.msra.mxu0 0
    %909 = vmatprep.subr.bf16.mxu0 0
    %910 = vmatpush1.bf16.msra.mxu0 0
    %911 = vmatprep.subr.bf16.mxu0 0
    %912 = vmatpush1.bf16.msra.mxu0 0
    %913 = vmatprep.subr.bf16.mxu0 0
    %914 = vmatpush1.bf16.msra.mxu0 0
    %915 = vmatprep.subr.bf16.mxu0 0
    %916 = vmatpush1.bf16.msra.mxu0 0
    %917 = vmatprep.subr.bf16.mxu0 0
    %918 = vmatpush1.bf16.msra.mxu0 0
    %919 = vmatprep.subr.bf16.mxu0 0
    %920 = vmatpush1.bf16.msra.mxu0 0
    %921 = vmatprep.subr.bf16.mxu0 0
    %922 = vmatpush1.bf16.msra.mxu0 0
    %923 = vmatprep.subr.bf16.mxu0 0
    %924 = vmatpush1.bf16.msra.mxu0 0
    %925 = vmatprep.subr.bf16.mxu0 0
    %926 = vmatpush1.bf16.msra.mxu0 0
    %927 = vmatprep.subr.bf16.mxu0 0
    %928 = vmatpush1.bf16.msra.mxu0 0
    %929 = vmatprep.subr.bf16.mxu0 0
    %930 = vmatpush1.bf16.msra.mxu0 0
    %931 = vmatprep.subr.bf16.mxu0 0
    %932 = vmatpush1.bf16.msra.mxu0 0
    %933 = vmatprep.mubr.bf16.mxu0 0
    %934 = vmatmul.mubr.bf16.gmra.mrb[0].mxu0 %v896
    %v935 = vpop.f32.mrb[0].mxu0
    %v936 = vadd.f32 0.0, %v935
    %v937 = vpop.f32.mrb[0].mxu0
    %v938 = vpop.f32.mrb[0].mxu0
    %v939 = vadd.f32 0.0, %v938
    %v940 = vpop.f32.mrb[0].mxu0
    %941 = vdwg.mxu0
    %v944 = vunpack.c.l.b16 %v469
    %v945 = vunpack.c.l.b16 %v470
    %v946 = vpack.c.b16 %v945, %v944
    %v948 = vsel %vm257, %v946, 0
    %v951 = vsel %vm379, %v471, 0
    %953 = vmatprep.subr.bf16.mxu0 0
    %954 = vmatpush1.bf16.msra.mxu0 %v951
    %955 = vmatprep.subr.bf16.mxu0 0
    %956 = vmatpush1.bf16.msra.mxu0 0
    %957 = vmatprep.subr.bf16.mxu0 0
    %958 = vmatpush1.bf16.msra.mxu0 0
    %959 = vmatprep.subr.bf16.mxu0 0
    %960 = vmatpush1.bf16.msra.mxu0 0
    %961 = vmatprep.subr.bf16.mxu0 0
    %962 = vmatpush1.bf16.msra.mxu0 0
    %963 = vmatprep.subr.bf16.mxu0 0
    %964 = vmatpush1.bf16.msra.mxu0 0
    %965 = vmatprep.subr.bf16.mxu0 0
    %966 = vmatpush1.bf16.msra.mxu0 0
    %967 = vmatprep.subr.bf16.mxu0 0
    %968 = vmatpush1.bf16.msra.mxu0 0
    %969 = vmatprep.subr.bf16.mxu0 0
    %970 = vmatpush1.bf16.msra.mxu0 0
    %971 = vmatprep.subr.bf16.mxu0 0
    %972 = vmatpush1.bf16.msra.mxu0 0
    %973 = vmatprep.subr.bf16.mxu0 0
    %974 = vmatpush1.bf16.msra.mxu0 0
    %975 = vmatprep.subr.bf16.mxu0 0
    %976 = vmatpush1.bf16.msra.mxu0 0
    %977 = vmatprep.subr.bf16.mxu0 0
    %978 = vmatpush1.bf16.msra.mxu0 0
    %979 = vmatprep.subr.bf16.mxu0 0
    %980 = vmatpush1.bf16.msra.mxu0 0
    %981 = vmatprep.subr.bf16.mxu0 0
    %982 = vmatpush1.bf16.msra.mxu0 0
    %983 = vmatprep.subr.bf16.mxu0 0
    %984 = vmatpush1.bf16.msra.mxu0 0
    %985 = vmatprep.mubr.bf16.mxu0 0
    %986 = vmatmul.mubr.bf16.gmra.mrb[0].mxu0 %v948
    %v987 = vpop.f32.mrb[0].mxu0
    %v988 = vadd.f32 %v936, %v987
    %v989 = vpop.f32.mrb[0].mxu0
    %v990 = vpop.f32.mrb[0].mxu0
    %v991 = vadd.f32 %v939, %v990
    %v992 = vpop.f32.mrb[0].mxu0
    %993 = vdwg.mxu0
    %s994 = scalar_lea.vmem %s3, 32
    %v995 = vld [vmem:[%s994] sm:$0xf]
    %v996 = vld [vmem:[%s994 + $0x4] sm:$0xf]
    %v997 = vld [vmem:[%s994 + $0x8] sm:$0xf]
    %v998 = vld [vmem:[%s994 + $0xc] sm:$0xf]
    %v999 = vlaneseq
    %v1000 = vshrl.u32 %v999, 7
    %v1001 = vsub.s32 2, %v1000
    %v1002 = vrot.slane %v43, %v1001
    %v1007 = vunpack.c.l.b16 %v995
    %v1008 = vunpack.c.l.b16 %v996
    %v1009 = vunpack.c.l.b16 %v997
    %v1010 = vunpack.c.l.b16 %v998
    %v1011 = vpack.c.b16 %v1008, %v1007
    %v1012 = vpack.c.b16 %v1010, %v1009
    %1015 = vmatprep.subr.bf16.mxu0 0
    %1016 = vmatpush1.bf16.msra.mxu0 %v1011
    %1017 = vmatprep.subr.bf16.mxu0 0
    %1018 = vmatpush1.bf16.msra.mxu0 %v1012
    %1019 = vmatprep.subr.bf16.mxu0 0
    %1020 = vmatpush1.bf16.msra.mxu0 0
    %1021 = vmatprep.subr.bf16.mxu0 0
    %1022 = vmatpush1.bf16.msra.mxu0 0
    %1023 = vmatprep.subr.bf16.mxu0 0
    %1024 = vmatpush1.bf16.msra.mxu0 0
    %1025 = vmatprep.subr.bf16.mxu0 0
    %1026 = vmatpush1.bf16.msra.mxu0 0
    %1027 = vmatprep.subr.bf16.mxu0 0
    %1028 = vmatpush1.bf16.msra.mxu0 0
    %1029 = vmatprep.subr.bf16.mxu0 0
    %1030 = vmatpush1.bf16.msra.mxu0 0
    %1031 = vmatprep.subr.bf16.mxu0 0
    %1032 = vmatpush1.bf16.msra.mxu0 0
    %1033 = vmatprep.subr.bf16.mxu0 0
    %1034 = vmatpush1.bf16.msra.mxu0 0
    %1035 = vmatprep.subr.bf16.mxu0 0
    %1036 = vmatpush1.bf16.msra.mxu0 0
    %1037 = vmatprep.subr.bf16.mxu0 0
    %1038 = vmatpush1.bf16.msra.mxu0 0
    %1039 = vmatprep.subr.bf16.mxu0 0
    %1040 = vmatpush1.bf16.msra.mxu0 0
    %1041 = vmatprep.subr.bf16.mxu0 0
    %1042 = vmatpush1.bf16.msra.mxu0 0
    %1043 = vmatprep.subr.bf16.mxu0 0
    %1044 = vmatpush1.bf16.msra.mxu0 0
    %1045 = vmatprep.subr.bf16.mxu0 0
    %1046 = vmatpush1.bf16.msra.mxu0 0
    %1047 = vmatprep.mubr.bf16.mxu0 0
    %1048 = vmatmul.mubr.bf16.gmra.mrb[0].mxu0 %v68
    %v1049 = vpop.f32.mrb[0].mxu0
    %v1050 = vadd.f32 %v1002, %v1049
    %v1051 = vpop.f32.mrb[0].mxu0
    %v1052 = vpop.f32.mrb[0].mxu0
    %v1053 = vadd.f32 %v1002, %v1052
    %v1054 = vpop.f32.mrb[0].mxu0
    %1055 = vdwg.mxu0
    %s1056 = scalar_lea.vmem %s4, 32
    %v1057 = vld [vmem:[%s1056] sm:$0xf]
    %v1058 = vld [vmem:[%s1056 + $0x4] sm:$0xf]
    %v1059 = vld [vmem:[%s1056 + $0x8] sm:$0xf]
    %v1060 = vld [vmem:[%s1056 + $0xc] sm:$0xf]
    %v1061 = vlaneseq
    %v1062 = vshrl.u32 %v1061, 7
    %v1063 = vsub.s32 6, %v1062
    %v1064 = vrot.slane %v43, %v1063
    %v1069 = vunpack.c.l.b16 %v1057
    %v1070 = vunpack.c.l.b16 %v1058
    %v1071 = vunpack.c.l.b16 %v1059
    %v1072 = vunpack.c.l.b16 %v1060
    %v1073 = vpack.c.b16 %v1070, %v1069
    %v1074 = vpack.c.b16 %v1072, %v1071
    %1077 = vmatprep.subr.bf16.mxu0 0
    %1078 = vmatpush1.bf16.msra.mxu0 %v1073
    %1079 = vmatprep.subr.bf16.mxu0 0
    %1080 = vmatpush1.bf16.msra.mxu0 %v1074
    %1081 = vmatprep.subr.bf16.mxu0 0
    %1082 = vmatpush1.bf16.msra.mxu0 0
    %1083 = vmatprep.subr.bf16.mxu0 0
    %1084 = vmatpush1.bf16.msra.mxu0 0
    %1085 = vmatprep.subr.bf16.mxu0 0
    %1086 = vmatpush1.bf16.msra.mxu0 0
    %1087 = vmatprep.subr.bf16.mxu0 0
    %1088 = vmatpush1.bf16.msra.mxu0 0
    %1089 = vmatprep.subr.bf16.mxu0 0
    %1090 = vmatpush1.bf16.msra.mxu0 0
    %1091 = vmatprep.subr.bf16.mxu0 0
    %1092 = vmatpush1.bf16.msra.mxu0 0
    %1093 = vmatprep.subr.bf16.mxu0 0
    %1094 = vmatpush1.bf16.msra.mxu0 0
    %1095 = vmatprep.subr.bf16.mxu0 0
    %1096 = vmatpush1.bf16.msra.mxu0 0
    %1097 = vmatprep.subr.bf16.mxu0 0
    %1098 = vmatpush1.bf16.msra.mxu0 0
    %1099 = vmatprep.subr.bf16.mxu0 0
    %1100 = vmatpush1.bf16.msra.mxu0 0
    %1101 = vmatprep.subr.bf16.mxu0 0
    %1102 = vmatpush1.bf16.msra.mxu0 0
    %1103 = vmatprep.subr.bf16.mxu0 0
    %1104 = vmatpush1.bf16.msra.mxu0 0
    %1105 = vmatprep.subr.bf16.mxu0 0
    %1106 = vmatpush1.bf16.msra.mxu0 0
    %1107 = vmatprep.subr.bf16.mxu0 0
    %1108 = vmatpush1.bf16.msra.mxu0 0
    %1109 = vmatprep.mubr.bf16.mxu0 0
    %1110 = vmatmul.mubr.bf16.gmra.mrb[0].mxu0 %v132
    %v1111 = vpop.f32.mrb[0].mxu0
    %v1112 = vadd.f32 %v1064, %v1111
    %v1113 = vpop.f32.mrb[0].mxu0
    %v1114 = vpop.f32.mrb[0].mxu0
    %v1115 = vadd.f32 %v1064, %v1114
    %v1116 = vpop.f32.mrb[0].mxu0
    %1117 = vdwg.mxu0
    %s1118 = scalar_lea.vmem %s5, 32
    %v1119 = vld [vmem:[%s1118] sm:$0xf]
    %v1120 = vld [vmem:[%s1118 + $0x4] sm:$0xf]
    %v1121 = vld [vmem:[%s1118 + $0x8] sm:$0xf]
    %v1122 = vld [vmem:[%s1118 + $0xc] sm:$0xf]
    %v1123 = vlaneseq
    %v1124 = vshrl.u32 %v1123, 7
    %v1125 = vsub.s32 2, %v1124
    %v1126 = vrot.slane %v44, %v1125
    %v1131 = vunpack.c.l.b16 %v1119
    %v1132 = vunpack.c.l.b16 %v1120
    %v1133 = vunpack.c.l.b16 %v1121
    %v1134 = vunpack.c.l.b16 %v1122
    %v1135 = vpack.c.b16 %v1132, %v1131
    %v1136 = vpack.c.b16 %v1134, %v1133
    %1139 = vmatprep.subr.bf16.mxu0 0
    %1140 = vmatpush1.bf16.msra.mxu0 %v1135
    %1141 = vmatprep.subr.bf16.mxu0 0
    %1142 = vmatpush1.bf16.msra.mxu0 %v1136
    %1143 = vmatprep.subr.bf16.mxu0 0
    %1144 = vmatpush1.bf16.msra.mxu0 0
    %1145 = vmatprep.subr.bf16.mxu0 0
    %1146 = vmatpush1.bf16.msra.mxu0 0
    %1147 = vmatprep.subr.bf16.mxu0 0
    %1148 = vmatpush1.bf16.msra.mxu0 0
    %1149 = vmatprep.subr.bf16.mxu0 0
    %1150 = vmatpush1.bf16.msra.mxu0 0
    %1151 = vmatprep.subr.bf16.mxu0 0
    %1152 = vmatpush1.bf16.msra.mxu0 0
    %1153 = vmatprep.subr.bf16.mxu0 0
    %1154 = vmatpush1.bf16.msra.mxu0 0
    %1155 = vmatprep.subr.bf16.mxu0 0
    %1156 = vmatpush1.bf16.msra.mxu0 0
    %1157 = vmatprep.subr.bf16.mxu0 0
    %1158 = vmatpush1.bf16.msra.mxu0 0
    %1159 = vmatprep.subr.bf16.mxu0 0
    %1160 = vmatpush1.bf16.msra.mxu0 0
    %1161 = vmatprep.subr.bf16.mxu0 0
    %1162 = vmatpush1.bf16.msra.mxu0 0
    %1163 = vmatprep.subr.bf16.mxu0 0
    %1164 = vmatpush1.bf16.msra.mxu0 0
    %1165 = vmatprep.subr.bf16.mxu0 0
    %1166 = vmatpush1.bf16.msra.mxu0 0
    %1167 = vmatprep.subr.bf16.mxu0 0
    %1168 = vmatpush1.bf16.msra.mxu0 0
    %1169 = vmatprep.subr.bf16.mxu0 0
    %1170 = vmatpush1.bf16.msra.mxu0 0
    %1171 = vmatprep.mubr.bf16.mxu0 0
    %1172 = vmatmul.mubr.bf16.gmra.mrb[0].mxu0 %v196
    %v1173 = vpop.f32.mrb[0].mxu0
    %v1174 = vadd.f32 %v1126, %v1173
    %v1175 = vpop.f32.mrb[0].mxu0
    %v1176 = vpop.f32.mrb[0].mxu0
    %v1177 = vadd.f32 %v1126, %v1176
    %v1178 = vpop.f32.mrb[0].mxu0
    %1179 = vdwg.mxu0
    %v1180 = vpack.c.bf16 %v1053, %v1050
    %v1182 = vunpack.c.l.b16 %v1180
    %v1183 = vunpack.c.h.b16 %v1180
    %v1184 = vpack.c.b16 %v1182, %v1182
    %v1185 = vpack.c.b16 %v1183, %v1183
    %v1186 = vpack.c.bf16 %v1115, %v1112
    %v1188 = vunpack.c.l.b16 %v1186
    %v1189 = vunpack.c.h.b16 %v1186
    %v1190 = vpack.c.b16 %v1188, %v1188
    %v1191 = vpack.c.b16 %v1189, %v1189
    %v1192 = vpack.c.bf16 %v1177, %v1174
    %v1194 = vunpack.c.l.b16 %v1192
    %v1195 = vunpack.c.h.b16 %v1192
    %v1196 = vpack.c.b16 %v1194, %v1194
    %v1197 = vpack.c.b16 %v1195, %v1195
    %v1199 = vsel %vm257, %v1184, 0
    %v1202 = vsel %vm257, %v1190, 0
    %1204 = vmatprep.subr.bf16.mxu0 0
    %1205 = vmatpush1.bf16.xpose.msra.mxu0 %v1202
    %1206 = vmatprep.subr.bf16.mxu0 0
    %1207 = vmatpush1.bf16.xpose.msra.mxu0 0
    %1208 = vmatprep.subr.bf16.mxu0 0
    %1209 = vmatpush1.bf16.xpose.msra.mxu0 0
    %1210 = vmatprep.subr.bf16.mxu0 0
    %1211 = vmatpush1.bf16.xpose.msra.mxu0 0
    %1212 = vmatprep.subr.bf16.mxu0 0
    %1213 = vmatpush1.bf16.xpose.msra.mxu0 0
    %1214 = vmatprep.subr.bf16.mxu0 0
    %1215 = vmatpush1.bf16.xpose.msra.mxu0 0
    %1216 = vmatprep.subr.bf16.mxu0 0
    %1217 = vmatpush1.bf16.xpose.msra.mxu0 0
    %1218 = vmatprep.subr.bf16.mxu0 0
    %1219 = vmatpush1.bf16.xpose.msra.mxu0 0
    %1220 = vmatprep.subr.bf16.mxu0 0
    %1221 = vmatpush1.bf16.xpose.msra.mxu0 0
    %1222 = vmatprep.subr.bf16.mxu0 0
    %1223 = vmatpush1.bf16.xpose.msra.mxu0 0
    %1224 = vmatprep.subr.bf16.mxu0 0
    %1225 = vmatpush1.bf16.xpose.msra.mxu0 0
    %1226 = vmatprep.subr.bf16.mxu0 0
    %1227 = vmatpush1.bf16.xpose.msra.mxu0 0
    %1228 = vmatprep.subr.bf16.mxu0 0
    %1229 = vmatpush1.bf16.xpose.msra.mxu0 0
    %1230 = vmatprep.subr.bf16.mxu0 0
    %1231 = vmatpush1.bf16.xpose.msra.mxu0 0
    %1232 = vmatprep.subr.bf16.mxu0 0
    %1233 = vmatpush1.bf16.xpose.msra.mxu0 0
    %1234 = vmatprep.subr.bf16.mxu0 0
    %1235 = vmatpush1.bf16.xpose.msra.mxu0 0
    %1236 = vmatprep.mubr.bf16.mxu0 0
    %1237 = vmatmul.mubr.bf16.gmra.mrb[0].mxu0 %v1199
    %v1238 = vpop.f32.mrb[0].mxu0
    %v1239 = vadd.f32 0.0, %v1238
    %v1240 = vpop.f32.mrb[0].mxu0
    %v1241 = vpop.f32.mrb[0].mxu0
    %v1242 = vpop.f32.mrb[0].mxu0
    %1243 = vdwg.mxu0
    %v1245 = vsel %vm257, %v1185, 0
    %v1248 = vsel %vm257, %v1191, 0
    %1250 = vmatprep.subr.bf16.mxu0 0
    %1251 = vmatpush1.bf16.xpose.msra.mxu0 %v1248
    %1252 = vmatprep.subr.bf16.mxu0 0
    %1253 = vmatpush1.bf16.xpose.msra.mxu0 0
    %1254 = vmatprep.subr.bf16.mxu0 0
    %1255 = vmatpush1.bf16.xpose.msra.mxu0 0
    %1256 = vmatprep.subr.bf16.mxu0 0
    %1257 = vmatpush1.bf16.xpose.msra.mxu0 0
    %1258 = vmatprep.subr.bf16.mxu0 0
    %1259 = vmatpush1.bf16.xpose.msra.mxu0 0
    %1260 = vmatprep.subr.bf16.mxu0 0
    %1261 = vmatpush1.bf16.xpose.msra.mxu0 0
    %1262 = vmatprep.subr.bf16.mxu0 0
    %1263 = vmatpush1.bf16.xpose.msra.mxu0 0
    %1264 = vmatprep.subr.bf16.mxu0 0
    %1265 = vmatpush1.bf16.xpose.msra.mxu0 0
    %1266 = vmatprep.subr.bf16.mxu0 0
    %1267 = vmatpush1.bf16.xpose.msra.mxu0 0
    %1268 = vmatprep.subr.bf16.mxu0 0
    %1269 = vmatpush1.bf16.xpose.msra.mxu0 0
    %1270 = vmatprep.subr.bf16.mxu0 0
    %1271 = vmatpush1.bf16.xpose.msra.mxu0 0
    %1272 = vmatprep.subr.bf16.mxu0 0
    %1273 = vmatpush1.bf16.xpose.msra.mxu0 0
    %1274 = vmatprep.subr.bf16.mxu0 0
    %1275 = vmatpush1.bf16.xpose.msra.mxu0 0
    %1276 = vmatprep.subr.bf16.mxu0 0
    %1277 = vmatpush1.bf16.xpose.msra.mxu0 0
    %1278 = vmatprep.subr.bf16.mxu0 0
    %1279 = vmatpush1.bf16.xpose.msra.mxu0 0
    %1280 = vmatprep.subr.bf16.mxu0 0
    %1281 = vmatpush1.bf16.xpose.msra.mxu0 0
    %1282 = vmatprep.mubr.bf16.mxu0 0
    %1283 = vmatmul.mubr.bf16.gmra.mrb[0].mxu0 %v1245
    %v1284 = vpop.f32.mrb[0].mxu0
    %v1285 = vadd.f32 0.0, %v1284
    %v1286 = vpop.f32.mrb[0].mxu0
    %v1287 = vpop.f32.mrb[0].mxu0
    %v1288 = vpop.f32.mrb[0].mxu0
    %1289 = vdwg.mxu0
    %v1290 = vmul.f32 %v1239, 0.35355338
    %v1291 = vmul.f32 %v1285, 0.35355338
    %v1292 = vsel %vm257, %v1290, -inf
    %1293 = vmax.xlane.f32.xlu0 %v1292
    %v1294 = vpop.xlane.xlu0 %1293
    %v1295 = vsel %vm257, %v1291, -inf
    %1296 = vmax.xlane.f32.xlu0 %v1295
    %v1297 = vpop.xlane.xlu0 %1296
    %v1298 = vsub.f32 %v1290, %v1294
    %v1299 = vsub.f32 %v1291, %v1297
    %v1300 = vmul.f32 %v1298, 1.442695
    %v1301 = vpow.pop %v1300
    %v1302 = vmul.f32 %v1299, 1.442695
    %v1303 = vpow.pop %v1302
    %v1304 = vsel %vm257, %v1301, 0.0
    %1305 = vadd.xlane.f32.xlu0 %v1304
    %v1306 = vpop.xlane.xlu0 %1305
    %v1307 = vsel %vm257, %v1303, 0.0
    %1308 = vadd.xlane.f32.xlu0 %v1307
    %v1309 = vpop.xlane.xlu0 %1308
    %v1310 = vrcp.pop %v1306
    %v1311 = vrcp.pop %v1309
    %v1312 = vmul.f32 %v1301, %v1310
    %v1313 = vmul.f32 %v1303, %v1311
    %v1314 = vpack.c.bf16 %v1312, %v1312
    %v1315 = vpack.c.bf16 %v1313, %v1313
    %v1317 = vsel %vm257, %v1314, 0
    %v1320 = vsel %vm379, %v1196, 0
    %1322 = vmatprep.subr.bf16.mxu0 0
    %1323 = vmatpush1.bf16.msra.mxu0 %v1320
    %1324 = vmatprep.subr.bf16.mxu0 0
    %1325 = vmatpush1.bf16.msra.mxu0 0
    %1326 = vmatprep.subr.bf16.mxu0 0
    %1327 = vmatpush1.bf16.msra.mxu0 0
    %1328 = vmatprep.subr.bf16.mxu0 0
    %1329 = vmatpush1.bf16.msra.mxu0 0
    %1330 = vmatprep.subr.bf16.mxu0 0
    %1331 = vmatpush1.bf16.msra.mxu0 0
    %1332 = vmatprep.subr.bf16.mxu0 0
    %1333 = vmatpush1.bf16.msra.mxu0 0
    %1334 = vmatprep.subr.bf16.mxu0 0
    %1335 = vmatpush1.bf16.msra.mxu0 0
    %1336 = vmatprep.subr.bf16.mxu0 0
    %1337 = vmatpush1.bf16.msra.mxu0 0
    %1338 = vmatprep.subr.bf16.mxu0 0
    %1339 = vmatpush1.bf16.msra.mxu0 0
    %1340 = vmatprep.subr.bf16.mxu0 0
    %1341 = vmatpush1.bf16.msra.mxu0 0
    %1342 = vmatprep.subr.bf16.mxu0 0
    %1343 = vmatpush1.bf16.msra.mxu0 0
    %1344 = vmatprep.subr.bf16.mxu0 0
    %1345 = vmatpush1.bf16.msra.mxu0 0
    %1346 = vmatprep.subr.bf16.mxu0 0
    %1347 = vmatpush1.bf16.msra.mxu0 0
    %1348 = vmatprep.subr.bf16.mxu0 0
    %1349 = vmatpush1.bf16.msra.mxu0 0
    %1350 = vmatprep.subr.bf16.mxu0 0
    %1351 = vmatpush1.bf16.msra.mxu0 0
    %1352 = vmatprep.subr.bf16.mxu0 0
    %1353 = vmatpush1.bf16.msra.mxu0 0
    %1354 = vmatprep.mubr.bf16.mxu0 0
    %1355 = vmatmul.mubr.bf16.gmra.mrb[0].mxu0 %v1317
    %v1356 = vpop.f32.mrb[0].mxu0
    %v1357 = vadd.f32 0.0, %v1356
    %v1358 = vpop.f32.mrb[0].mxu0
    %v1359 = vpop.f32.mrb[0].mxu0
    %v1360 = vpop.f32.mrb[0].mxu0
    %1361 = vdwg.mxu0
    %v1363 = vsel %vm257, %v1315, 0
    %v1366 = vsel %vm379, %v1197, 0
    %1368 = vmatprep.subr.bf16.mxu0 0
    %1369 = vmatpush1.bf16.msra.mxu0 %v1366
    %1370 = vmatprep.subr.bf16.mxu0 0
    %1371 = vmatpush1.bf16.msra.mxu0 0
    %1372 = vmatprep.subr.bf16.mxu0 0
    %1373 = vmatpush1.bf16.msra.mxu0 0
    %1374 = vmatprep.subr.bf16.mxu0 0
    %1375 = vmatpush1.bf16.msra.mxu0 0
    %1376 = vmatprep.subr.bf16.mxu0 0
    %1377 = vmatpush1.bf16.msra.mxu0 0
    %1378 = vmatprep.subr.bf16.mxu0 0
    %1379 = vmatpush1.bf16.msra.mxu0 0
    %1380 = vmatprep.subr.bf16.mxu0 0
    %1381 = vmatpush1.bf16.msra.mxu0 0
    %1382 = vmatprep.subr.bf16.mxu0 0
    %1383 = vmatpush1.bf16.msra.mxu0 0
    %1384 = vmatprep.subr.bf16.mxu0 0
    %1385 = vmatpush1.bf16.msra.mxu0 0
    %1386 = vmatprep.subr.bf16.mxu0 0
    %1387 = vmatpush1.bf16.msra.mxu0 0
    %1388 = vmatprep.subr.bf16.mxu0 0
    %1389 = vmatpush1.bf16.msra.mxu0 0
    %1390 = vmatprep.subr.bf16.mxu0 0
    %1391 = vmatpush1.bf16.msra.mxu0 0
    %1392 = vmatprep.subr.bf16.mxu0 0
    %1393 = vmatpush1.bf16.msra.mxu0 0
    %1394 = vmatprep.subr.bf16.mxu0 0
    %1395 = vmatpush1.bf16.msra.mxu0 0
    %1396 = vmatprep.subr.bf16.mxu0 0
    %1397 = vmatpush1.bf16.msra.mxu0 0
    %1398 = vmatprep.subr.bf16.mxu0 0
    %1399 = vmatpush1.bf16.msra.mxu0 0
    %1400 = vmatprep.mubr.bf16.mxu0 0
    %1401 = vmatmul.mubr.bf16.gmra.mrb[0].mxu0 %v1363
    %v1402 = vpop.f32.mrb[0].mxu0
    %v1403 = vadd.f32 0.0, %v1402
    %v1404 = vpop.f32.mrb[0].mxu0
    %v1405 = vpop.f32.mrb[0].mxu0
    %v1406 = vpop.f32.mrb[0].mxu0
    %1407 = vdwg.mxu0
    %v1408 = vpack.c.bf16 %v1357, %v1357
    %v1409 = vpack.c.bf16 %v1403, %v1403
    %s1410 = scalar_lea.vmem %s6, 8
    %v1411 = vld [vmem:[%s1410] sm:$0xf]
    %v1414 = vunpack.c.l.b16 %v1408
    %v1415 = vunpack.c.l.b16 %v1409
    %v1416 = vpack.c.b16 %v1415, %v1414
    %v1418 = vsel %vm257, %v1416, 0
    %v1421 = vsel %vm379, %v1411, 0
    %1423 = vmatprep.subr.bf16.mxu0 0
    %1424 = vmatpush1.bf16.msra.mxu0 %v1421
    %1425 = vmatprep.subr.bf16.mxu0 0
    %1426 = vmatpush1.bf16.msra.mxu0 0
    %1427 = vmatprep.subr.bf16.mxu0 0
    %1428 = vmatpush1.bf16.msra.mxu0 0
    %1429 = vmatprep.subr.bf16.mxu0 0
    %1430 = vmatpush1.bf16.msra.mxu0 0
    %1431 = vmatprep.subr.bf16.mxu0 0
    %1432 = vmatpush1.bf16.msra.mxu0 0
    %1433 = vmatprep.subr.bf16.mxu0 0
    %1434 = vmatpush1.bf16.msra.mxu0 0
    %1435 = vmatprep.subr.bf16.mxu0 0
    %1436 = vmatpush1.bf16.msra.mxu0 0
    %1437 = vmatprep.subr.bf16.mxu0 0
    %1438 = vmatpush1.bf16.msra.mxu0 0
    %1439 = vmatprep.subr.bf16.mxu0 0
    %1440 = vmatpush1.bf16.msra.mxu0 0
    %1441 = vmatprep.subr.bf16.mxu0 0
    %1442 = vmatpush1.bf16.msra.mxu0 0
    %1443 = vmatprep.subr.bf16.mxu0 0
    %1444 = vmatpush1.bf16.msra.mxu0 0
    %1445 = vmatprep.subr.bf16.mxu0 0
    %1446 = vmatpush1.bf16.msra.mxu0 0
    %1447 = vmatprep.subr.bf16.mxu0 0
    %1448 = vmatpush1.bf16.msra.mxu0 0
    %1449 = vmatprep.subr.bf16.mxu0 0
    %1450 = vmatpush1.bf16.msra.mxu0 0
    %1451 = vmatprep.subr.bf16.mxu0 0
    %1452 = vmatpush1.bf16.msra.mxu0 0
    %1453 = vmatprep.subr.bf16.mxu0 0
    %1454 = vmatpush1.bf16.msra.mxu0 0
    %1455 = vmatprep.mubr.bf16.mxu0 0
    %1456 = vmatmul.mubr.bf16.gmra.mrb[0].mxu0 %v1418
    %v1457 = vpop.f32.mrb[0].mxu0
    %v1458 = vadd.f32 0.0, %v1457
    %v1459 = vpop.f32.mrb[0].mxu0
    %v1460 = vpop.f32.mrb[0].mxu0
    %v1461 = vadd.f32 0.0, %v1460
    %v1462 = vpop.f32.mrb[0].mxu0
    %1463 = vdwg.mxu0
    %v1464 = vadd.f32 %v988, %v1458
    %v1465 = vadd.f32 %v991, %v1461
    %s1466 = scalar_lea.vmem %s3, 48
    %v1467 = vld [vmem:[%s1466] sm:$0xf]
    %v1468 = vld [vmem:[%s1466 + $0x4] sm:$0xf]
    %v1469 = vld [vmem:[%s1466 + $0x8] sm:$0xf]
    %v1470 = vld [vmem:[%s1466 + $0xc] sm:$0xf]
    %v1471 = vlaneseq
    %v1472 = vshrl.u32 %v1471, 7
    %v1473 = vsub.s32 3, %v1472
    %v1474 = vrot.slane %v43, %v1473
    %v1479 = vunpack.c.l.b16 %v1467
    %v1480 = vunpack.c.l.b16 %v1468
    %v1481 = vunpack.c.l.b16 %v1469
    %v1482 = vunpack.c.l.b16 %v1470
    %v1483 = vpack.c.b16 %v1480, %v1479
    %v1484 = vpack.c.b16 %v1482, %v1481
    %1487 = vmatprep.subr.bf16.mxu0 0
    %1488 = vmatpush1.bf16.msra.mxu0 %v1483
    %1489 = vmatprep.subr.bf16.mxu0 0
    %1490 = vmatpush1.bf16.msra.mxu0 %v1484
    %1491 = vmatprep.subr.bf16.mxu0 0
    %1492 = vmatpush1.bf16.msra.mxu0 0
    %1493 = vmatprep.subr.bf16.mxu0 0
    %1494 = vmatpush1.bf16.msra.mxu0 0
    %1495 = vmatprep.subr.bf16.mxu0 0
    %1496 = vmatpush1.bf16.msra.mxu0 0
    %1497 = vmatprep.subr.bf16.mxu0 0
    %1498 = vmatpush1.bf16.msra.mxu0 0
    %1499 = vmatprep.subr.bf16.mxu0 0
    %1500 = vmatpush1.bf16.msra.mxu0 0
    %1501 = vmatprep.subr.bf16.mxu0 0
    %1502 = vmatpush1.bf16.msra.mxu0 0
    %1503 = vmatprep.subr.bf16.mxu0 0
    %1504 = vmatpush1.bf16.msra.mxu0 0
    %1505 = vmatprep.subr.bf16.mxu0 0
    %1506 = vmatpush1.bf16.msra.mxu0 0
    %1507 = vmatprep.subr.bf16.mxu0 0
    %1508 = vmatpush1.bf16.msra.mxu0 0
    %1509 = vmatprep.subr.bf16.mxu0 0
    %1510 = vmatpush1.bf16.msra.mxu0 0
    %1511 = vmatprep.subr.bf16.mxu0 0
    %1512 = vmatpush1.bf16.msra.mxu0 0
    %1513 = vmatprep.subr.bf16.mxu0 0
    %1514 = vmatpush1.bf16.msra.mxu0 0
    %1515 = vmatprep.subr.bf16.mxu0 0
    %1516 = vmatpush1.bf16.msra.mxu0 0
    %1517 = vmatprep.subr.bf16.mxu0 0
    %1518 = vmatpush1.bf16.msra.mxu0 0
    %1519 = vmatprep.mubr.bf16.mxu0 0
    %1520 = vmatmul.mubr.bf16.gmra.mrb[0].mxu0 %v68
    %v1521 = vpop.f32.mrb[0].mxu0
    %v1522 = vadd.f32 %v1474, %v1521
    %v1523 = vpop.f32.mrb[0].mxu0
    %v1524 = vpop.f32.mrb[0].mxu0
    %v1525 = vadd.f32 %v1474, %v1524
    %v1526 = vpop.f32.mrb[0].mxu0
    %1527 = vdwg.mxu0
    %s1528 = scalar_lea.vmem %s4, 48
    %v1529 = vld [vmem:[%s1528] sm:$0xf]
    %v1530 = vld [vmem:[%s1528 + $0x4] sm:$0xf]
    %v1531 = vld [vmem:[%s1528 + $0x8] sm:$0xf]
    %v1532 = vld [vmem:[%s1528 + $0xc] sm:$0xf]
    %v1533 = vlaneseq
    %v1534 = vshrl.u32 %v1533, 7
    %v1535 = vsub.s32 7, %v1534
    %v1536 = vrot.slane %v43, %v1535
    %v1541 = vunpack.c.l.b16 %v1529
    %v1542 = vunpack.c.l.b16 %v1530
    %v1543 = vunpack.c.l.b16 %v1531
    %v1544 = vunpack.c.l.b16 %v1532
    %v1545 = vpack.c.b16 %v1542, %v1541
    %v1546 = vpack.c.b16 %v1544, %v1543
    %1549 = vmatprep.subr.bf16.mxu0 0
    %1550 = vmatpush1.bf16.msra.mxu0 %v1545
    %1551 = vmatprep.subr.bf16.mxu0 0
    %1552 = vmatpush1.bf16.msra.mxu0 %v1546
    %1553 = vmatprep.subr.bf16.mxu0 0
    %1554 = vmatpush1.bf16.msra.mxu0 0
    %1555 = vmatprep.subr.bf16.mxu0 0
    %1556 = vmatpush1.bf16.msra.mxu0 0
    %1557 = vmatprep.subr.bf16.mxu0 0
    %1558 = vmatpush1.bf16.msra.mxu0 0
    %1559 = vmatprep.subr.bf16.mxu0 0
    %1560 = vmatpush1.bf16.msra.mxu0 0
    %1561 = vmatprep.subr.bf16.mxu0 0
    %1562 = vmatpush1.bf16.msra.mxu0 0
    %1563 = vmatprep.subr.bf16.mxu0 0
    %1564 = vmatpush1.bf16.msra.mxu0 0
    %1565 = vmatprep.subr.bf16.mxu0 0
    %1566 = vmatpush1.bf16.msra.mxu0 0
    %1567 = vmatprep.subr.bf16.mxu0 0
    %1568 = vmatpush1.bf16.msra.mxu0 0
    %1569 = vmatprep.subr.bf16.mxu0 0
    %1570 = vmatpush1.bf16.msra.mxu0 0
    %1571 = vmatprep.subr.bf16.mxu0 0
    %1572 = vmatpush1.bf16.msra.mxu0 0
    %1573 = vmatprep.subr.bf16.mxu0 0
    %1574 = vmatpush1.bf16.msra.mxu0 0
    %1575 = vmatprep.subr.bf16.mxu0 0
    %1576 = vmatpush1.bf16.msra.mxu0 0
    %1577 = vmatprep.subr.bf16.mxu0 0
    %1578 = vmatpush1.bf16.msra.mxu0 0
    %1579 = vmatprep.subr.bf16.mxu0 0
    %1580 = vmatpush1.bf16.msra.mxu0 0
    %1581 = vmatprep.mubr.bf16.mxu0 0
    %1582 = vmatmul.mubr.bf16.gmra.mrb[0].mxu0 %v132
    %v1583 = vpop.f32.mrb[0].mxu0
    %v1584 = vadd.f32 %v1536, %v1583
    %v1585 = vpop.f32.mrb[0].mxu0
    %v1586 = vpop.f32.mrb[0].mxu0
    %v1587 = vadd.f32 %v1536, %v1586
    %v1588 = vpop.f32.mrb[0].mxu0
    %1589 = vdwg.mxu0
    %s1590 = scalar_lea.vmem %s5, 48
    %v1591 = vld [vmem:[%s1590] sm:$0xf]
    %v1592 = vld [vmem:[%s1590 + $0x4] sm:$0xf]
    %v1593 = vld [vmem:[%s1590 + $0x8] sm:$0xf]
    %v1594 = vld [vmem:[%s1590 + $0xc] sm:$0xf]
    %v1595 = vlaneseq
    %v1596 = vshrl.u32 %v1595, 7
    %v1597 = vsub.s32 3, %v1596
    %v1598 = vrot.slane %v44, %v1597
    %v1603 = vunpack.c.l.b16 %v1591
    %v1604 = vunpack.c.l.b16 %v1592
    %v1605 = vunpack.c.l.b16 %v1593
    %v1606 = vunpack.c.l.b16 %v1594
    %v1607 = vpack.c.b16 %v1604, %v1603
    %v1608 = vpack.c.b16 %v1606, %v1605
    %1611 = vmatprep.subr.bf16.mxu0 0
    %1612 = vmatpush1.bf16.msra.mxu0 %v1607
    %1613 = vmatprep.subr.bf16.mxu0 0
    %1614 = vmatpush1.bf16.msra.mxu0 %v1608
    %1615 = vmatprep.subr.bf16.mxu0 0
    %1616 = vmatpush1.bf16.msra.mxu0 0
    %1617 = vmatprep.subr.bf16.mxu0 0
    %1618 = vmatpush1.bf16.msra.mxu0 0
    %1619 = vmatprep.subr.bf16.mxu0 0
    %1620 = vmatpush1.bf16.msra.mxu0 0
    %1621 = vmatprep.subr.bf16.mxu0 0
    %1622 = vmatpush1.bf16.msra.mxu0 0
    %1623 = vmatprep.subr.bf16.mxu0 0
    %1624 = vmatpush1.bf16.msra.mxu0 0
    %1625 = vmatprep.subr.bf16.mxu0 0
    %1626 = vmatpush1.bf16.msra.mxu0 0
    %1627 = vmatprep.subr.bf16.mxu0 0
    %1628 = vmatpush1.bf16.msra.mxu0 0
    %1629 = vmatprep.subr.bf16.mxu0 0
    %1630 = vmatpush1.bf16.msra.mxu0 0
    %1631 = vmatprep.subr.bf16.mxu0 0
    %1632 = vmatpush1.bf16.msra.mxu0 0
    %1633 = vmatprep.subr.bf16.mxu0 0
    %1634 = vmatpush1.bf16.msra.mxu0 0
    %1635 = vmatprep.subr.bf16.mxu0 0
    %1636 = vmatpush1.bf16.msra.mxu0 0
    %1637 = vmatprep.subr.bf16.mxu0 0
    %1638 = vmatpush1.bf16.msra.mxu0 0
    %1639 = vmatprep.subr.bf16.mxu0 0
    %1640 = vmatpush1.bf16.msra.mxu0 0
    %1641 = vmatprep.subr.bf16.mxu0 0
    %1642 = vmatpush1.bf16.msra.mxu0 0
    %1643 = vmatprep.mubr.bf16.mxu0 0
    %1644 = vmatmul.mubr.bf16.gmra.mrb[0].mxu0 %v196
    %v1645 = vpop.f32.mrb[0].mxu0
    %v1646 = vadd.f32 %v1598, %v1645
    %v1647 = vpop.f32.mrb[0].mxu0
    %v1648 = vpop.f32.mrb[0].mxu0
    %v1649 = vadd.f32 %v1598, %v1648
    %v1650 = vpop.f32.mrb[0].mxu0
    %1651 = vdwg.mxu0
    %v1652 = vpack.c.bf16 %v1525, %v1522
    %v1654 = vunpack.c.l.b16 %v1652
    %v1655 = vunpack.c.h.b16 %v1652
    %v1656 = vpack.c.b16 %v1654, %v1654
    %v1657 = vpack.c.b16 %v1655, %v1655
    %v1658 = vpack.c.bf16 %v1587, %v1584
    %v1660 = vunpack.c.l.b16 %v1658
    %v1661 = vunpack.c.h.b16 %v1658
    %v1662 = vpack.c.b16 %v1660, %v1660
    %v1663 = vpack.c.b16 %v1661, %v1661
    %v1664 = vpack.c.bf16 %v1649, %v1646
    %v1666 = vunpack.c.l.b16 %v1664
    %v1667 = vunpack.c.h.b16 %v1664
    %v1668 = vpack.c.b16 %v1666, %v1666
    %v1669 = vpack.c.b16 %v1667, %v1667
    %v1671 = vsel %vm257, %v1656, 0
    %v1674 = vsel %vm257, %v1662, 0
    %1676 = vmatprep.subr.bf16.mxu0 0
    %1677 = vmatpush1.bf16.xpose.msra.mxu0 %v1674
    %1678 = vmatprep.subr.bf16.mxu0 0
    %1679 = vmatpush1.bf16.xpose.msra.mxu0 0
    %1680 = vmatprep.subr.bf16.mxu0 0
    %1681 = vmatpush1.bf16.xpose.msra.mxu0 0
    %1682 = vmatprep.subr.bf16.mxu0 0
    %1683 = vmatpush1.bf16.xpose.msra.mxu0 0
    %1684 = vmatprep.subr.bf16.mxu0 0
    %1685 = vmatpush1.bf16.xpose.msra.mxu0 0
    %1686 = vmatprep.subr.bf16.mxu0 0
    %1687 = vmatpush1.bf16.xpose.msra.mxu0 0
    %1688 = vmatprep.subr.bf16.mxu0 0
    %1689 = vmatpush1.bf16.xpose.msra.mxu0 0
    %1690 = vmatprep.subr.bf16.mxu0 0
    %1691 = vmatpush1.bf16.xpose.msra.mxu0 0
    %1692 = vmatprep.subr.bf16.mxu0 0
    %1693 = vmatpush1.bf16.xpose.msra.mxu0 0
    %1694 = vmatprep.subr.bf16.mxu0 0
    %1695 = vmatpush1.bf16.xpose.msra.mxu0 0
    %1696 = vmatprep.subr.bf16.mxu0 0
    %1697 = vmatpush1.bf16.xpose.msra.mxu0 0
    %1698 = vmatprep.subr.bf16.mxu0 0
    %1699 = vmatpush1.bf16.xpose.msra.mxu0 0
    %1700 = vmatprep.subr.bf16.mxu0 0
    %1701 = vmatpush1.bf16.xpose.msra.mxu0 0
    %1702 = vmatprep.subr.bf16.mxu0 0
    %1703 = vmatpush1.bf16.xpose.msra.mxu0 0
    %1704 = vmatprep.subr.bf16.mxu0 0
    %1705 = vmatpush1.bf16.xpose.msra.mxu0 0
    %1706 = vmatprep.subr.bf16.mxu0 0
    %1707 = vmatpush1.bf16.xpose.msra.mxu0 0
    %1708 = vmatprep.mubr.bf16.mxu0 0
    %1709 = vmatmul.mubr.bf16.gmra.mrb[0].mxu0 %v1671
    %v1710 = vpop.f32.mrb[0].mxu0
    %v1711 = vadd.f32 0.0, %v1710
    %v1712 = vpop.f32.mrb[0].mxu0
    %v1713 = vpop.f32.mrb[0].mxu0
    %v1714 = vpop.f32.mrb[0].mxu0
    %1715 = vdwg.mxu0
    %v1717 = vsel %vm257, %v1657, 0
    %v1720 = vsel %vm257, %v1663, 0
    %1722 = vmatprep.subr.bf16.mxu0 0
    %1723 = vmatpush1.bf16.xpose.msra.mxu0 %v1720
    %1724 = vmatprep.subr.bf16.mxu0 0
    %1725 = vmatpush1.bf16.xpose.msra.mxu0 0
    %1726 = vmatprep.subr.bf16.mxu0 0
    %1727 = vmatpush1.bf16.xpose.msra.mxu0 0
    %1728 = vmatprep.subr.bf16.mxu0 0
    %1729 = vmatpush1.bf16.xpose.msra.mxu0 0
    %1730 = vmatprep.subr.bf16.mxu0 0
    %1731 = vmatpush1.bf16.xpose.msra.mxu0 0
    %1732 = vmatprep.subr.bf16.mxu0 0
    %1733 = vmatpush1.bf16.xpose.msra.mxu0 0
    %1734 = vmatprep.subr.bf16.mxu0 0
    %1735 = vmatpush1.bf16.xpose.msra.mxu0 0
    %1736 = vmatprep.subr.bf16.mxu0 0
    %1737 = vmatpush1.bf16.xpose.msra.mxu0 0
    %1738 = vmatprep.subr.bf16.mxu0 0
    %1739 = vmatpush1.bf16.xpose.msra.mxu0 0
    %1740 = vmatprep.subr.bf16.mxu0 0
    %1741 = vmatpush1.bf16.xpose.msra.mxu0 0
    %1742 = vmatprep.subr.bf16.mxu0 0
    %1743 = vmatpush1.bf16.xpose.msra.mxu0 0
    %1744 = vmatprep.subr.bf16.mxu0 0
    %1745 = vmatpush1.bf16.xpose.msra.mxu0 0
    %1746 = vmatprep.subr.bf16.mxu0 0
    %1747 = vmatpush1.bf16.xpose.msra.mxu0 0
    %1748 = vmatprep.subr.bf16.mxu0 0
    %1749 = vmatpush1.bf16.xpose.msra.mxu0 0
    %1750 = vmatprep.subr.bf16.mxu0 0
    %1751 = vmatpush1.bf16.xpose.msra.mxu0 0
    %1752 = vmatprep.subr.bf16.mxu0 0
    %1753 = vmatpush1.bf16.xpose.msra.mxu0 0
    %1754 = vmatprep.mubr.bf16.mxu0 0
    %1755 = vmatmul.mubr.bf16.gmra.mrb[0].mxu0 %v1717
    %v1756 = vpop.f32.mrb[0].mxu0
    %v1757 = vadd.f32 0.0, %v1756
    %v1758 = vpop.f32.mrb[0].mxu0
    %v1759 = vpop.f32.mrb[0].mxu0
    %v1760 = vpop.f32.mrb[0].mxu0
    %1761 = vdwg.mxu0
    %v1762 = vmul.f32 %v1711, 0.35355338
    %v1763 = vmul.f32 %v1757, 0.35355338
    %v1764 = vsel %vm257, %v1762, -inf
    %1765 = vmax.xlane.f32.xlu0 %v1764
    %v1766 = vpop.xlane.xlu0 %1765
    %v1767 = vsel %vm257, %v1763, -inf
    %1768 = vmax.xlane.f32.xlu0 %v1767
    %v1769 = vpop.xlane.xlu0 %1768
    %v1770 = vsub.f32 %v1762, %v1766
    %v1771 = vsub.f32 %v1763, %v1769
    %v1772 = vmul.f32 %v1770, 1.442695
    %v1773 = vpow.pop %v1772
    %v1774 = vmul.f32 %v1771, 1.442695
    %v1775 = vpow.pop %v1774
    %v1776 = vsel %vm257, %v1773, 0.0
    %1777 = vadd.xlane.f32.xlu0 %v1776
    %v1778 = vpop.xlane.xlu0 %1777
    %v1779 = vsel %vm257, %v1775, 0.0
    %1780 = vadd.xlane.f32.xlu0 %v1779
    %v1781 = vpop.xlane.xlu0 %1780
    %v1782 = vrcp.pop %v1778
    %v1783 = vrcp.pop %v1781
    %v1784 = vmul.f32 %v1773, %v1782
    %v1785 = vmul.f32 %v1775, %v1783
    %v1786 = vpack.c.bf16 %v1784, %v1784
    %v1787 = vpack.c.bf16 %v1785, %v1785
    %v1789 = vsel %vm257, %v1786, 0
    %v1792 = vsel %vm379, %v1668, 0
    %1794 = vmatprep.subr.bf16.mxu0 0
    %1795 = vmatpush1.bf16.msra.mxu0 %v1792
    %1796 = vmatprep.subr.bf16.mxu0 0
    %1797 = vmatpush1.bf16.msra.mxu0 0
    %1798 = vmatprep.subr.bf16.mxu0 0
    %1799 = vmatpush1.bf16.msra.mxu0 0
    %1800 = vmatprep.subr.bf16.mxu0 0
    %1801 = vmatpush1.bf16.msra.mxu0 0
    %1802 = vmatprep.subr.bf16.mxu0 0
    %1803 = vmatpush1.bf16.msra.mxu0 0
    %1804 = vmatprep.subr.bf16.mxu0 0
    %1805 = vmatpush1.bf16.msra.mxu0 0
    %1806 = vmatprep.subr.bf16.mxu0 0
    %1807 = vmatpush1.bf16.msra.mxu0 0
    %1808 = vmatprep.subr.bf16.mxu0 0
    %1809 = vmatpush1.bf16.msra.mxu0 0
    %1810 = vmatprep.subr.bf16.mxu0 0
    %1811 = vmatpush1.bf16.msra.mxu0 0
    %1812 = vmatprep.subr.bf16.mxu0 0
    %1813 = vmatpush1.bf16.msra.mxu0 0
    %1814 = vmatprep.subr.bf16.mxu0 0
    %1815 = vmatpush1.bf16.msra.mxu0 0
    %1816 = vmatprep.subr.bf16.mxu0 0
    %1817 = vmatpush1.bf16.msra.mxu0 0
    %1818 = vmatprep.subr.bf16.mxu0 0
    %1819 = vmatpush1.bf16.msra.mxu0 0
    %1820 = vmatprep.subr.bf16.mxu0 0
    %1821 = vmatpush1.bf16.msra.mxu0 0
    %1822 = vmatprep.subr.bf16.mxu0 0
    %1823 = vmatpush1.bf16.msra.mxu0 0
    %1824 = vmatprep.subr.bf16.mxu0 0
    %1825 = vmatpush1.bf16.msra.mxu0 0
    %1826 = vmatprep.mubr.bf16.mxu0 0
    %1827 = vmatmul.mubr.bf16.gmra.mrb[0].mxu0 %v1789
    %v1828 = vpop.f32.mrb[0].mxu0
    %v1829 = vadd.f32 0.0, %v1828
    %v1830 = vpop.f32.mrb[0].mxu0
    %v1831 = vpop.f32.mrb[0].mxu0
    %v1832 = vpop.f32.mrb[0].mxu0
    %1833 = vdwg.mxu0
    %v1835 = vsel %vm257, %v1787, 0
    %v1838 = vsel %vm379, %v1669, 0
    %1840 = vmatprep.subr.bf16.mxu0 0
    %1841 = vmatpush1.bf16.msra.mxu0 %v1838
    %1842 = vmatprep.subr.bf16.mxu0 0
    %1843 = vmatpush1.bf16.msra.mxu0 0
    %1844 = vmatprep.subr.bf16.mxu0 0
    %1845 = vmatpush1.bf16.msra.mxu0 0
    %1846 = vmatprep.subr.bf16.mxu0 0
    %1847 = vmatpush1.bf16.msra.mxu0 0
    %1848 = vmatprep.subr.bf16.mxu0 0
    %1849 = vmatpush1.bf16.msra.mxu0 0
    %1850 = vmatprep.subr.bf16.mxu0 0
    %1851 = vmatpush1.bf16.msra.mxu0 0
    %1852 = vmatprep.subr.bf16.mxu0 0
    %1853 = vmatpush1.bf16.msra.mxu0 0
    %1854 = vmatprep.subr.bf16.mxu0 0
    %1855 = vmatpush1.bf16.msra.mxu0 0
    %1856 = vmatprep.subr.bf16.mxu0 0
    %1857 = vmatpush1.bf16.msra.mxu0 0
    %1858 = vmatprep.subr.bf16.mxu0 0
    %1859 = vmatpush1.bf16.msra.mxu0 0
    %1860 = vmatprep.subr.bf16.mxu0 0
    %1861 = vmatpush1.bf16.msra.mxu0 0
    %1862 = vmatprep.subr.bf16.mxu0 0
    %1863 = vmatpush1.bf16.msra.mxu0 0
    %1864 = vmatprep.subr.bf16.mxu0 0
    %1865 = vmatpush1.bf16.msra.mxu0 0
    %1866 = vmatprep.subr.bf16.mxu0 0
    %1867 = vmatpush1.bf16.msra.mxu0 0
    %1868 = vmatprep.subr.bf16.mxu0 0
    %1869 = vmatpush1.bf16.msra.mxu0 0
    %1870 = vmatprep.subr.bf16.mxu0 0
    %1871 = vmatpush1.bf16.msra.mxu0 0
    %1872 = vmatprep.mubr.bf16.mxu0 0
    %1873 = vmatmul.mubr.bf16.gmra.mrb[0].mxu0 %v1835
    %v1874 = vpop.f32.mrb[0].mxu0
    %v1875 = vadd.f32 0.0, %v1874
    %v1876 = vpop.f32.mrb[0].mxu0
    %v1877 = vpop.f32.mrb[0].mxu0
    %v1878 = vpop.f32.mrb[0].mxu0
    %1879 = vdwg.mxu0
    %v1880 = vpack.c.bf16 %v1829, %v1829
    %v1881 = vpack.c.bf16 %v1875, %v1875
    %s1882 = scalar_lea.vmem %s6, 12
    %v1883 = vld [vmem:[%s1882] sm:$0xf]
    %v1886 = vunpack.c.l.b16 %v1880
    %v1887 = vunpack.c.l.b16 %v1881
    %v1888 = vpack.c.b16 %v1887, %v1886
    %v1890 = vsel %vm257, %v1888, 0
    %v1893 = vsel %vm379, %v1883, 0
    %1895 = vmatprep.subr.bf16.mxu0 0
    %1896 = vmatpush1.bf16.msra.mxu0 %v1893
    %1897 = vmatprep.subr.bf16.mxu0 0
    %1898 = vmatpush1.bf16.msra.mxu0 0
    %1899 = vmatprep.subr.bf16.mxu0 0
    %1900 = vmatpush1.bf16.msra.mxu0 0
    %1901 = vmatprep.subr.bf16.mxu0 0
    %1902 = vmatpush1.bf16.msra.mxu0 0
    %1903 = vmatprep.subr.bf16.mxu0 0
    %1904 = vmatpush1.bf16.msra.mxu0 0
    %1905 = vmatprep.subr.bf16.mxu0 0
    %1906 = vmatpush1.bf16.msra.mxu0 0
    %1907 = vmatprep.subr.bf16.mxu0 0
    %1908 = vmatpush1.bf16.msra.mxu0 0
    %1909 = vmatprep.subr.bf16.mxu0 0
    %1910 = vmatpush1.bf16.msra.mxu0 0
    %1911 = vmatprep.subr.bf16.mxu0 0
    %1912 = vmatpush1.bf16.msra.mxu0 0
    %1913 = vmatprep.subr.bf16.mxu0 0
    %1914 = vmatpush1.bf16.msra.mxu0 0
    %1915 = vmatprep.subr.bf16.mxu0 0
    %1916 = vmatpush1.bf16.msra.mxu0 0
    %1917 = vmatprep.subr.bf16.mxu0 0
    %1918 = vmatpush1.bf16.msra.mxu0 0
    %1919 = vmatprep.subr.bf16.mxu0 0
    %1920 = vmatpush1.bf16.msra.mxu0 0
    %1921 = vmatprep.subr.bf16.mxu0 0
    %1922 = vmatpush1.bf16.msra.mxu0 0
    %1923 = vmatprep.subr.bf16.mxu0 0
    %1924 = vmatpush1.bf16.msra.mxu0 0
    %1925 = vmatprep.subr.bf16.mxu0 0
    %1926 = vmatpush1.bf16.msra.mxu0 0
    %1927 = vmatprep.mubr.bf16.mxu0 0
    %1928 = vmatmul.mubr.bf16.gmra.mrb[0].mxu0 %v1890
    %v1929 = vpop.f32.mrb[0].mxu0
    %v1930 = vadd.f32 0.0, %v1929
    %v1931 = vpop.f32.mrb[0].mxu0
    %v1932 = vpop.f32.mrb[0].mxu0
    %v1933 = vadd.f32 0.0, %v1932
    %v1934 = vpop.f32.mrb[0].mxu0
    %1935 = vdwg.mxu0
    %v1936 = vadd.f32 %v1464, %v1930
    %v1937 = vadd.f32 %v1465, %v1933
    %v1939 = vlaneseq
    %v1940 = vshrl.u32 %v1939, 7
    %v1941 = vsub.s32 0, %v1940
    %v1942 = vrot.slane %v45, %v1941
    %v1944 = vadd.f32 %v1936, %v1942
    %v1945 = vadd.f32 %v1937, %v1942
    %1946 = vst.msk [vmem:[#allocation2] sm:$0xff] %vm66, %v1944
    %1947 = vst.msk [vmem:[#allocation2 + $0x8] sm:$0xff] %vm66, %v1945
    // Predicated region
    $region38: #{tpu_custom_call.1} parent=1 // pred_check
      _
    $region39: #{tpu_custom_call.1} parent=1 // pred_check_branch
      %1949 = sbr.rel (0) target = $region41
    $region40: #{tpu_custom_call.1} parent=1 // pred_region
      %s1951 = ssub.s32 256, 256
      %1952 = vsyncadd [#allocation3], %s1951
      %s1953 = sshll.u32 [#allocation2], 4
      %s1954 = int_to_ptr.vmem [resolvable:$true] %s1953
      %1959 = dma.vmem_to_hbm [thread:$0]  %s1954, 256, %s9, [#allocation3], 128, 128, 8
    $region41: #{tpu_custom_call.1} parent=1 // pred_fallthru
      _
    // Predicated region
    $region42: #{tpu_custom_call.1} parent=1 // pred_check
      _
    $region43: #{tpu_custom_call.1} parent=1 // pred_check_branch
      %1961 = sbr.rel (0) target = $region45
    $region44: #{tpu_custom_call.1} parent=1 // pred_region
      %1962 = dma.done [#allocation3], 256
    $region45: #{tpu_custom_call.1} parent=1 // pred_fallthru
      _
    %1963 = vsyncpa [#allocation3], 1

</llo_original>
